<compile_context>
chip_gen: v7x
topology: tpu7x:2x2x1
jax: 0.10.0
libtpu: 0.0.40
codegen_flags: <defaults>
</compile_context>

<pallas_src>
import jax
import jax.numpy as jnp
from jax import lax
from jax.experimental import pallas as pl
from jax.experimental.pallas import tpu as pltpu

BN_EPS = 1e-5
LANE = 128
SUBLANE = 8
_BAND_BUDGET = 24 << 20          # target per-step VMEM footprint for pass 1
_GROUP_BUDGET = 4 << 20          # target block size for the elementwise pass


def _round_up(v, m):
    return (v + m - 1) // m * m


def _vmem_limit(est_bytes):
    # Explicit scoped-VMEM limit: 2x estimate for headroom, floored at the
    # default-ish 32 MiB, capped at v7x's 64 MiB physical VMEM.
    return int(min(max(2 * est_bytes, 32 << 20), 64 << 20))


def _pick_band(h, w, cin_pad, k_pad, cout_pad, budget):
    """Largest divisor HT of H whose pass-1 per-step footprint fits `budget`."""
    wp = w + 2
    last = (1, 0)
    for ht in range(h, 0, -1):
        if h % ht:
            continue
        rows = ht * w
        est = (2 * ((ht + 2) * wp * cin_pad * 2        # input band (double-buffered)
                    + rows * cout_pad * 2              # bf16 conv-out block
                    + 8 * cout_pad * 4)                # stats block
               + rows * k_pad * 2                      # im2col patch scratch
               + rows * cout_pad * 4                   # f32 accumulator
               + k_pad * cout_pad * 2)                 # resident weights
        if est <= budget:
            return ht, est
        last = (ht, est)
    return last


def _pick_group(nbt, rows, cout, budget=_GROUP_BUDGET):
    """Largest divisor of the band count whose pass-2 block fits `budget`."""
    per = rows * cout * (2 + 4)                        # bf16 in + f32 out
    for g in range(nbt, 0, -1):
        if nbt % g == 0 and g * per <= budget:
            return g
    return 1


# ---------------------------------------------------------------------------
# Pass 1 kernel: 3x3 conv of one H-band as a single deep-K MXU matmul over an
# im2col patch tile built in VMEM scratch, plus per-band BN partials.
#   xb_ref    : (1, HT+2, W+2, Cin_pad)  bf16   band with 1-row halo
#   w_ref     : (K_pad, Cout_pad)        bf16   resident across the grid
#   y_ref     : (1, HT*W, Cout_pad)      bf16   conv output band
#   st_ref    : (1, 8,    Cout_pad)      f32    row0 = sum, row1 = sum-of-squares
#   patch_ref : (HT*W, K_pad)            bf16   VMEM scratch (im2col tile)
# ---------------------------------------------------------------------------
def _conv_stats_kernel(xb_ref, w_ref, y_ref, st_ref, patch_ref):
    _, hpb, wp, cin = xb_ref.shape
    ht, wo = hpb - 2, wp - 2
    rows = ht * wo
    k_pad, cout = w_ref.shape

    x = xb_ref[0]                                      # (hpb, wp, cin) bf16
    # im2col build: K is tap-major (dy, dx) then cin, matching w_ref's rows.
    for t in range(9):
        dy, dx = divmod(t, 3)
        patch_ref[:, t * cin:(t + 1) * cin] = (
            x[dy:dy + ht, dx:dx + wo, :].reshape(rows, cin))
    if k_pad > 9 * cin:                                # lane padding -> K = 128
        patch_ref[:, 9 * cin:] = jnp.zeros((rows, k_pad - 9 * cin),
                                           patch_ref.dtype)

    # One deep-K matmul on the MXU, f32 accumulation.
    acc = jnp.dot(patch_ref[...], w_ref[...], preferred_element_type=jnp.float32)

    # bf16 conv intermediate (halves pass-2 / writeback HBM traffic).
    y_ref[...] = acc[None].astype(y_ref.dtype)

    # Per-band BN partials from the f32 accumulator, one full (8, cout) store.
    st_ref[...] = jnp.concatenate(
        [jnp.sum(acc, axis=0, keepdims=True),
         jnp.sum(acc * acc, axis=0, keepdims=True),
         jnp.zeros((6, cout), jnp.float32)], axis=0)[None]


def _conv_stats_call(xb, w_mat, vmem_est):
    nbt, hpb, wp, cin_pad = xb.shape                  # nbt = N * num_bands
    k_pad, cout_pad = w_mat.shape
    ht, wo = hpb - 2, wp - 2
    rows = ht * wo

    flops = 2 * nbt * rows * k_pad * cout_pad
    bytes_accessed = (xb.size * 2 + w_mat.size * 2
                      + nbt * rows * cout_pad * 2 + nbt * 8 * cout_pad * 4)

    return pl.pallas_call(
        _conv_stats_kernel,
        out_shape=(
            jax.ShapeDtypeStruct((nbt, rows, cout_pad), jnp.bfloat16),  # conv out
            jax.ShapeDtypeStruct((nbt, 8, cout_pad), jnp.float32),      # partials
        ),
        grid_spec=pltpu.PrefetchScalarGridSpec(
            num_scalar_prefetch=0,
            grid=(nbt,),
            in_specs=[
                pl.BlockSpec((1, hpb, wp, cin_pad), lambda i: (i, 0, 0, 0)),
                pl.BlockSpec((k_pad, cout_pad), lambda i: (0, 0)),      # resident
            ],
            out_specs=[
                pl.BlockSpec((1, rows, cout_pad), lambda i: (i, 0, 0)),
                pl.BlockSpec((1, 8, cout_pad), lambda i: (i, 0, 0)),
            ],
            scratch_shapes=[pltpu.VMEM((rows, k_pad), jnp.bfloat16)],
        ),
        compiler_params=pltpu.CompilerParams(
            dimension_semantics=("parallel",),
            vmem_limit_bytes=_vmem_limit(vmem_est)),
        cost_estimate=pl.CostEstimate(flops=int(flops), transcendentals=0,
                                      bytes_accessed=int(bytes_accessed)),
    )(xb, w_mat)


# ---------------------------------------------------------------------------
# Pass 2 kernel (final layer only): y * scale + shift, then ReLU.
# ---------------------------------------------------------------------------
def _bn_relu_kernel(y_ref, scale_ref, shift_ref, o_ref):
    y = y_ref[...].astype(jnp.float32)
    o_ref[...] = jnp.maximum(y * scale_ref[...] + shift_ref[...],
                             0.0).astype(o_ref.dtype)


def _bn_relu_call(y, scale, shift):
    nbt, rows, cout = y.shape
    g = _pick_group(nbt, rows, cout)
    est = 2 * g * rows * cout * (2 + 4) + 2 * cout * 4 * 2
    return pl.pallas_call(
        _bn_relu_kernel,
        out_shape=jax.ShapeDtypeStruct((nbt, rows, cout), jnp.float32),
        grid_spec=pltpu.PrefetchScalarGridSpec(
            num_scalar_prefetch=0,
            grid=(nbt // g,),
            in_specs=[
                pl.BlockSpec((g, rows, cout), lambda i: (i, 0, 0)),
                pl.BlockSpec((1, 1, cout), lambda i: (0, 0, 0)),   # resident
                pl.BlockSpec((1, 1, cout), lambda i: (0, 0, 0)),   # resident
            ],
            out_specs=pl.BlockSpec((g, rows, cout), lambda i: (i, 0, 0)),
        ),
        compiler_params=pltpu.CompilerParams(
            dimension_semantics=("parallel",),
            vmem_limit_bytes=_vmem_limit(est)),
        cost_estimate=pl.CostEstimate(flops=2 * nbt * rows * cout, transcendentals=0,
                                      bytes_accessed=nbt * rows * cout * 6 + 2 * cout * 4),
    )(y, scale, shift)


# ---------------------------------------------------------------------------
# JAX glue: weight layout, padding / band-stacking, BN stat reduction.
# ---------------------------------------------------------------------------
def _weight_to_mat(w_oihw, cin_pad, k_pad, cout_pad):
    """(Cout, Cin, 3, 3) -> (K_pad, Cout_pad) bf16, rows = (dy*3+dx)*Cin_pad + ci."""
    cout, cin, kh, kw = w_oihw.shape
    w = jnp.transpose(w_oihw.astype(jnp.float32), (2, 3, 1, 0))       # (3,3,Cin,Cout)
    w = jnp.pad(w, ((0, 0), (0, 0), (0, cin_pad - cin), (0, cout_pad - cout)))
    w = w.reshape(kh * kw * cin_pad, cout_pad)
    w = jnp.pad(w, ((0, k_pad - kh * kw * cin_pad), (0, 0)))
    return w.astype(jnp.bfloat16)


def conv_block1_forward(x_nchw, params, band_budget=_BAND_BUDGET):
    """params: list of two dicts with conv_w, conv_b, bn_gamma, bn_beta."""
    n, _, h, w = x_nchw.shape
    src = jnp.transpose(x_nchw, (0, 2, 3, 1)).astype(jnp.float32)      # NHWC f32
    pending = None   # (y_bf16, scale, shift, cout_real, cout_pad) awaiting BN+ReLU

    for p in params:
        cout_real, cin_real = p["conv_w"].shape[0], p["conv_w"].shape[1]

        if pending is not None:
            # Previous layer's BN+ReLU + channel slice folded into this layer's
            # input prep (single fused XLA producer; no separate Pallas
            # elementwise pass / extra activation round trip between the convs).
            y_prev, sc, sh, c_real_prev, _ = pending
            z = jnp.maximum(y_prev.astype(jnp.float32) * sc + sh, 0.0)
            src = z[..., :c_real_prev].reshape(n, h, w, c_real_prev)

        cin = src.shape[-1]
        cin_pad = _round_up(cin, SUBLANE)
        cout_pad = _round_up(cout_real, LANE)
        k = 9 * cin_pad
        k_pad = LANE if k < LANE else k          # lane-dense im2col LHS for tiny Cin

        ht, est = _pick_band(h, w, cin_pad, k_pad, cout_pad, band_budget)
        nb = h // ht

        # Spatial pad=1, channel pad, bf16 cast, and halo band-stack in one XLA
        # producer (only 2 halo rows per band of duplication, no 9x im2col blow-up).
        xp = jnp.pad(src, ((0, 0), (1, 1), (1, 1),
                           (0, cin_pad - cin))).astype(jnp.bfloat16)
        if nb == 1:
            xb = xp[:, None]
        else:
            xb = jnp.stack([xp[:, i * ht:i * ht + ht + 2] for i in range(nb)],
                           axis=1)
        xb = xb.reshape(n * nb, ht + 2, w + 2, cin_pad)

        w_mat = _weight_to_mat(p["conv_w"], cin_pad, k_pad, cout_pad)
        # Conv bias p["conv_b"] intentionally unused: a per-channel constant is
        # cancelled by the batch-stat mean subtraction in BN (forward no-op).

        y, st = _conv_stats_call(xb, w_mat, est)                       # pass 1

        # Reduce per-band partials -> batch mean / biased var (PyTorch train-mode
        # BN), fold BN into one per-channel scale/shift.
        rows_total = n * h * w
        total = jnp.sum(st[:, 0, :], axis=0)
        total_sq = jnp.sum(st[:, 1, :], axis=0)
        mean = total / rows_total
        # TODO(synk): E[x^2]-E[x]^2 in f32 can lose precision for very large
        # N*H*W or large-mean activations; switch to a centered second pass if
        # tolerances ever tighten.
        var = jnp.maximum(total_sq / rows_total - mean * mean, 0.0)
        inv = lax.rsqrt(var + BN_EPS)
        gamma = jnp.pad(p["bn_gamma"].astype(jnp.float32), (0, cout_pad - cout_real))
        beta = jnp.pad(p["bn_beta"].astype(jnp.float32), (0, cout_pad - cout_real))
        scale = (gamma * inv).reshape(1, 1, cout_pad)
        shift = (beta - mean * gamma * inv).reshape(1, 1, cout_pad)
        pending = (y, scale, shift, cout_real, cout_pad)

    # Final layer's BN+ReLU via the Pallas elementwise pass (multi-MiB blocks).
    y, scale, shift, cout_real, cout_pad = pending
    z = _bn_relu_call(y, scale, shift)                                 # pass 2
    out = z.reshape(n, h, w, cout_pad)[..., :cout_real]
    return jnp.transpose(out, (0, 3, 1, 2))                            # NHWC -> NCHW


# ---------------------------------------------------------------------------
# Pure-JAX references.
#   matched=True mirrors the kernel's quantization points exactly (bf16 conv
#   inputs / weights, bf16 conv intermediate, f32 BN stats, bias dropped).
#   matched=False is the exact PyTorch-style f32 forward WITH the conv bias,
#   demonstrating that dropping the bias under batch-stat BN is a no-op.
# ---------------------------------------------------------------------------
def _reference_forward(x_nchw, params, matched=False):
    x = x_nchw.astype(jnp.float32)
    for p in params:
        lhs = x.astype(jnp.bfloat16) if matched else x
        rhs = p["conv_w"].astype(jnp.bfloat16) if matched else p["conv_w"]
        y = lax.conv_general_dilated(
            lhs, rhs, window_strides=(1, 1), padding=((1, 1), (1, 1)),
            dimension_numbers=("NCHW", "OIHW", "NCHW"),
            preferred_element_type=jnp.float32)
        if not matched:
            y = y + p["conv_b"][None, :, None, None]
        mean = jnp.mean(y, axis=(0, 2, 3), keepdims=True)
        var = jnp.mean((y - mean) ** 2, axis=(0, 2, 3), keepdims=True)
        scale = p["bn_gamma"][None, :, None, None] * lax.rsqrt(var + BN_EPS)
        shift = p["bn_beta"][None, :, None, None] - mean * scale
        yq = y.astype(jnp.bfloat16).astype(jnp.float32) if matched else y
        x = jnp.maximum(yq * scale + shift, 0.0)
    return x


def _init_params(key, ch_in, ch_out):
    """Deterministic synthetic init mirroring the module's parameter shapes."""
    params = []
    cin = ch_in
    for _ in range(2):
        k_w, k_b, k_g, k_be, key = jax.random.split(key, 5)
        fan_in = cin * 9
        bound = 1.0 / jnp.sqrt(fan_in)
        params.append({
            "conv_w": jax.random.uniform(k_w, (ch_out, cin, 3, 3),
                                         jnp.float32, -bound, bound),
            "conv_b": jax.random.uniform(k_b, (ch_out,),
                                         jnp.float32, -bound, bound),
            # Fresh BatchNorm2d defaults are gamma=1 / beta=0; randomize a bit so
            # the affine path is genuinely exercised by the check.
            "bn_gamma": jax.random.uniform(k_g, (ch_out,), jnp.float32, 0.5, 1.5),
            "bn_beta": jax.random.uniform(k_be, (ch_out,), jnp.float32, -0.5, 0.5),
        })
        cin = ch_out
    return params


if __name__ == "__main__":
    key = jax.random.PRNGKey(0)
    k_x, k_p = jax.random.split(key)

    N, CH_IN, CH_OUT, H, W = 2, 4, 8, 16, 16
    x = jax.random.normal(k_x, (N, CH_IN, H, W), jnp.float32)   # NCHW input
    params = _init_params(k_p, CH_IN, CH_OUT)

    fwd = jax.jit(conv_block1_forward, static_argnames=("band_budget",))
    out = jax.block_until_ready(fwd(x, params))
    assert out.shape == (N, CH_OUT, H, W)

    ref_matched = jax.block_until_ready(_reference_forward(x, params, matched=True))
    ref_f32 = jax.block_until_ready(_reference_forward(x, params, matched=False))
    err_m = float(jnp.max(jnp.abs(out - ref_matched)))
    err_f = float(jnp.max(jnp.abs(out - ref_f32)))
    assert err_m < 1e-2, f"mismatch vs bf16-matched reference: {err_m}"
    assert err_f < 2e-1, f"mismatch vs f32 reference: {err_f}"

    # Also exercise the H-banded (1-row halo) path that bounds per-step VMEM on
    # v7x by forcing a tiny band budget; numerics must be unchanged.
    out_b = jax.block_until_ready(fwd(x, params, band_budget=150_000))
    err_b = float(jnp.max(jnp.abs(out_b - ref_matched)))
    assert err_b < 1e-2, f"banded-path mismatch vs matched reference: {err_b}"

    print("KERNEL_OK")
</pallas_src>

<mosaic_0001>
module attributes {stable_mosaic.version = 11 : i64} {
  func.func @_conv_stats_kernel(%arg0: i32, %arg1: memref<1x18x18x8xbf16, #tpu.memory_space<vmem>>, %arg2: memref<128x128xbf16, #tpu.memory_space<vmem>>, %arg3: memref<1x256x128xbf16, #tpu.memory_space<vmem>>, %arg4: memref<1x8x128xf32, #tpu.memory_space<vmem>>, %arg5: memref<256x128xbf16, #tpu.memory_space<vmem>>) attributes {dimension_semantics = [#tpu.dimension_semantics<parallel>], iteration_bounds = array<i64: 2>, scalar_prefetch = 0 : i64, scratch_operands = 1 : i64, tpu.core_type = #tpu.core_type<tc>, window_params = [{transform_indices = @transform_0, window_bounds = array<i64: 1, 18, 18, 8>}, {pipeline_mode = #tpu.pipeline_mode<synchronous>, transform_indices = @transform_1, window_bounds = array<i64: 128, 128>}, {transform_indices = @transform_2, window_bounds = array<i64: 1, 256, 128>}, {transform_indices = @transform_3, window_bounds = array<i64: 1, 8, 128>}]} {
    %c0 = arith.constant 0 : index
    %c0_0 = arith.constant 0 : index
    %c0_1 = arith.constant 0 : index
    %c0_2 = arith.constant 0 : index
    %0 = vector.load %arg1[%c0, %c0_0, %c0_1, %c0_2] : memref<1x18x18x8xbf16, #tpu.memory_space<vmem>>, vector<1x18x18x8xbf16>
    %1 = vector.shape_cast %0 : vector<1x18x18x8xbf16> to vector<18x18x8xbf16>
    %2 = vector.extract_strided_slice %1 {offsets = [0, 0, 0], sizes = [16, 16, 8], strides = [1, 1, 1]} : vector<18x18x8xbf16> to vector<16x16x8xbf16>
    %3 = vector.shape_cast %2 : vector<16x16x8xbf16> to vector<256x8xbf16>
    %c0_3 = arith.constant 0 : index
    %c0_4 = arith.constant 0 : index
    %4 = vector.load %arg5[%c0_3, %c0_4] : memref<256x128xbf16, #tpu.memory_space<vmem>>, vector<256x8xbf16>
    tpu.vector_store %arg5[%c0_3, %c0_4], %3 {strides = array<i32>} : memref<256x128xbf16, #tpu.memory_space<vmem>>, vector<256x8xbf16>,
    %5 = vector.extract_strided_slice %1 {offsets = [0, 1, 0], sizes = [16, 16, 8], strides = [1, 1, 1]} : vector<18x18x8xbf16> to vector<16x16x8xbf16>
    %6 = vector.shape_cast %5 : vector<16x16x8xbf16> to vector<256x8xbf16>
    %c0_5 = arith.constant 0 : index
    %c8 = arith.constant 8 : index
    %7 = vector.load %arg5[%c0_5, %c8] : memref<256x128xbf16, #tpu.memory_space<vmem>>, vector<256x8xbf16>
    tpu.vector_store %arg5[%c0_5, %c8], %6 {strides = array<i32>} : memref<256x128xbf16, #tpu.memory_space<vmem>>, vector<256x8xbf16>,
    %8 = vector.extract_strided_slice %1 {offsets = [0, 2, 0], sizes = [16, 16, 8], strides = [1, 1, 1]} : vector<18x18x8xbf16> to vector<16x16x8xbf16>
    %9 = vector.shape_cast %8 : vector<16x16x8xbf16> to vector<256x8xbf16>
    %c0_6 = arith.constant 0 : index
    %c16 = arith.constant 16 : index
    %10 = vector.load %arg5[%c0_6, %c16] : memref<256x128xbf16, #tpu.memory_space<vmem>>, vector<256x8xbf16>
    tpu.vector_store %arg5[%c0_6, %c16], %9 {strides = array<i32>} : memref<256x128xbf16, #tpu.memory_space<vmem>>, vector<256x8xbf16>,
    %11 = vector.extract_strided_slice %1 {offsets = [1, 0, 0], sizes = [16, 16, 8], strides = [1, 1, 1]} : vector<18x18x8xbf16> to vector<16x16x8xbf16>
    %12 = vector.shape_cast %11 : vector<16x16x8xbf16> to vector<256x8xbf16>
    %c0_7 = arith.constant 0 : index
    %c24 = arith.constant 24 : index
    %13 = vector.load %arg5[%c0_7, %c24] : memref<256x128xbf16, #tpu.memory_space<vmem>>, vector<256x8xbf16>
    tpu.vector_store %arg5[%c0_7, %c24], %12 {strides = array<i32>} : memref<256x128xbf16, #tpu.memory_space<vmem>>, vector<256x8xbf16>,
    %14 = vector.extract_strided_slice %1 {offsets = [1, 1, 0], sizes = [16, 16, 8], strides = [1, 1, 1]} : vector<18x18x8xbf16> to vector<16x16x8xbf16>
    %15 = vector.shape_cast %14 : vector<16x16x8xbf16> to vector<256x8xbf16>
    %c0_8 = arith.constant 0 : index
    %c32 = arith.constant 32 : index
    %16 = vector.load %arg5[%c0_8, %c32] : memref<256x128xbf16, #tpu.memory_space<vmem>>, vector<256x8xbf16>
    tpu.vector_store %arg5[%c0_8, %c32], %15 {strides = array<i32>} : memref<256x128xbf16, #tpu.memory_space<vmem>>, vector<256x8xbf16>,
    %17 = vector.extract_strided_slice %1 {offsets = [1, 2, 0], sizes = [16, 16, 8], strides = [1, 1, 1]} : vector<18x18x8xbf16> to vector<16x16x8xbf16>
    %18 = vector.shape_cast %17 : vector<16x16x8xbf16> to vector<256x8xbf16>
    %c0_9 = arith.constant 0 : index
    %c40 = arith.constant 40 : index
    %19 = vector.load %arg5[%c0_9, %c40] : memref<256x128xbf16, #tpu.memory_space<vmem>>, vector<256x8xbf16>
    tpu.vector_store %arg5[%c0_9, %c40], %18 {strides = array<i32>} : memref<256x128xbf16, #tpu.memory_space<vmem>>, vector<256x8xbf16>,
    %20 = vector.extract_strided_slice %1 {offsets = [2, 0, 0], sizes = [16, 16, 8], strides = [1, 1, 1]} : vector<18x18x8xbf16> to vector<16x16x8xbf16>
    %21 = vector.shape_cast %20 : vector<16x16x8xbf16> to vector<256x8xbf16>
    %c0_10 = arith.constant 0 : index
    %c48 = arith.constant 48 : index
    %22 = vector.load %arg5[%c0_10, %c48] : memref<256x128xbf16, #tpu.memory_space<vmem>>, vector<256x8xbf16>
    tpu.vector_store %arg5[%c0_10, %c48], %21 {strides = array<i32>} : memref<256x128xbf16, #tpu.memory_space<vmem>>, vector<256x8xbf16>,
    %23 = vector.extract_strided_slice %1 {offsets = [2, 1, 0], sizes = [16, 16, 8], strides = [1, 1, 1]} : vector<18x18x8xbf16> to vector<16x16x8xbf16>
    %24 = vector.shape_cast %23 : vector<16x16x8xbf16> to vector<256x8xbf16>
    %c0_11 = arith.constant 0 : index
    %c56 = arith.constant 56 : index
    %25 = vector.load %arg5[%c0_11, %c56] : memref<256x128xbf16, #tpu.memory_space<vmem>>, vector<256x8xbf16>
    tpu.vector_store %arg5[%c0_11, %c56], %24 {strides = array<i32>} : memref<256x128xbf16, #tpu.memory_space<vmem>>, vector<256x8xbf16>,
    %26 = vector.extract_strided_slice %1 {offsets = [2, 2, 0], sizes = [16, 16, 8], strides = [1, 1, 1]} : vector<18x18x8xbf16> to vector<16x16x8xbf16>
    %27 = vector.shape_cast %26 : vector<16x16x8xbf16> to vector<256x8xbf16>
    %c0_12 = arith.constant 0 : index
    %c64 = arith.constant 64 : index
    %28 = vector.load %arg5[%c0_12, %c64] : memref<256x128xbf16, #tpu.memory_space<vmem>>, vector<256x8xbf16>
    tpu.vector_store %arg5[%c0_12, %c64], %27 {strides = array<i32>} : memref<256x128xbf16, #tpu.memory_space<vmem>>, vector<256x8xbf16>,
    %cst = arith.constant 0.000000e+00 : bf16
    %29 = vector.broadcast %cst : bf16 to vector<256x56xbf16>
    %c0_13 = arith.constant 0 : index
    %c72 = arith.constant 72 : index
    %30 = vector.load %arg5[%c0_13, %c72] : memref<256x128xbf16, #tpu.memory_space<vmem>>, vector<256x56xbf16>
    tpu.vector_store %arg5[%c0_13, %c72], %29 {strides = array<i32>} : memref<256x128xbf16, #tpu.memory_space<vmem>>, vector<256x56xbf16>,
    %c0_14 = arith.constant 0 : index
    %c0_15 = arith.constant 0 : index
    %31 = vector.load %arg5[%c0_14, %c0_15] : memref<256x128xbf16, #tpu.memory_space<vmem>>, vector<256x128xbf16>
    %c0_16 = arith.constant 0 : index
    %c0_17 = arith.constant 0 : index
    %32 = vector.load %arg2[%c0_16, %c0_17] : memref<128x128xbf16, #tpu.memory_space<vmem>>, vector<128x128xbf16>
    %cst_18 = arith.constant dense<0.000000e+00> : vector<256x128xf32>
    %33 = tpu.matmul %31, %32, %cst_18 {dimension_numbers = #tpu.dot_dimension_numbers<[1], [0], [0], [1], [0, 0, 1, 1], [], []>} : vector<256x128xbf16>, vector<128x128xbf16>, vector<256x128xf32> -> vector<256x128xf32>
    %34 = vector.shape_cast %33 : vector<256x128xf32> to vector<1x256x128xf32>
    %35 = arith.truncf %34 : vector<1x256x128xf32> to vector<1x256x128xbf16>
    %c0_19 = arith.constant 0 : index
    %c0_20 = arith.constant 0 : index
    %c0_21 = arith.constant 0 : index
    %36 = vector.load %arg3[%c0_19, %c0_20, %c0_21] : memref<1x256x128xbf16, #tpu.memory_space<vmem>>, vector<1x256x128xbf16>
    tpu.vector_store %arg3[%c0_19, %c0_20, %c0_21], %35 {strides = array<i32>} : memref<1x256x128xbf16, #tpu.memory_space<vmem>>, vector<1x256x128xbf16>,
    %cst_22 = arith.constant dense<0.000000e+00> : vector<128xf32>
    %37 = vector.multi_reduction <add>, %33, %cst_22 [0] : vector<256x128xf32> to vector<128xf32>
    %38 = vector.shape_cast %37 : vector<128xf32> to vector<1x128xf32>
    %39 = arith.mulf %33, %33 : vector<256x128xf32>
    %cst_23 = arith.constant dense<0.000000e+00> : vector<128xf32>
    %40 = vector.multi_reduction <add>, %39, %cst_23 [0] : vector<256x128xf32> to vector<128xf32>
    %41 = vector.shape_cast %40 : vector<128xf32> to vector<1x128xf32>
    %cst_24 = arith.constant 0.000000e+00 : f32
    %42 = vector.broadcast %cst_24 : f32 to vector<6x128xf32>
    %43 = tpu.concatenate %38, %41, %42 in 0 : vector<1x128xf32>, vector<1x128xf32>, vector<6x128xf32> -> vector<8x128xf32>
    %44 = vector.shape_cast %43 : vector<8x128xf32> to vector<1x8x128xf32>
    %c0_25 = arith.constant 0 : index
    %c0_26 = arith.constant 0 : index
    %c0_27 = arith.constant 0 : index
    %45 = vector.load %arg4[%c0_25, %c0_26, %c0_27] : memref<1x8x128xf32, #tpu.memory_space<vmem>>, vector<1x8x128xf32>
    tpu.vector_store %arg4[%c0_25, %c0_26, %c0_27], %44 {strides = array<i32>} : memref<1x8x128xf32, #tpu.memory_space<vmem>>, vector<1x8x128xf32>,
    return
  }
  func.func @transform_0(%arg0: i32) -> (i32, i32, i32, i32) {
    %c0_i32 = arith.constant 0 : i32
    %c0_i32_0 = arith.constant 0 : i32
    %c0_i32_1 = arith.constant 0 : i32
    %c0_i32_2 = arith.constant 0 : i32
    return %arg0, %c0_i32, %c0_i32_0, %c0_i32_1 : i32, i32, i32, i32
  }
  func.func @transform_1(%arg0: i32) -> (i32, i32) {
    %c0_i32 = arith.constant 0 : i32
    %c0_i32_0 = arith.constant 0 : i32
    %c0_i32_1 = arith.constant 0 : i32
    return %c0_i32, %c0_i32_0 : i32, i32
  }
  func.func @transform_2(%arg0: i32) -> (i32, i32, i32) {
    %c0_i32 = arith.constant 0 : i32
    %c0_i32_0 = arith.constant 0 : i32
    %c0_i32_1 = arith.constant 0 : i32
    return %arg0, %c0_i32, %c0_i32_0 : i32, i32, i32
  }
  func.func @transform_3(%arg0: i32) -> (i32, i32, i32) {
    %c0_i32 = arith.constant 0 : i32
    %c0_i32_0 = arith.constant 0 : i32
    %c0_i32_1 = arith.constant 0 : i32
    return %arg0, %c0_i32, %c0_i32_0 : i32, i32, i32
  }
}

module attributes {stable_mosaic.version = 11 : i64} {
  func.func @_bn_relu_kernel(%arg0: i32, %arg1: memref<2x256x128xbf16, #tpu.memory_space<vmem>>, %arg2: memref<1x1x128xf32, #tpu.memory_space<vmem>>, %arg3: memref<1x1x128xf32, #tpu.memory_space<vmem>>, %arg4: memref<2x256x128xf32, #tpu.memory_space<vmem>>) attributes {dimension_semantics = [#tpu.dimension_semantics<parallel>], iteration_bounds = array<i64: 1>, scalar_prefetch = 0 : i64, scratch_operands = 0 : i64, tpu.core_type = #tpu.core_type<tc>, window_params = [{transform_indices = @transform_0, window_bounds = array<i64: 2, 256, 128>}, {pipeline_mode = #tpu.pipeline_mode<synchronous>, transform_indices = @transform_1, window_bounds = array<i64: 1, 1, 128>}, {pipeline_mode = #tpu.pipeline_mode<synchronous>, transform_indices = @transform_2, window_bounds = array<i64: 1, 1, 128>}, {transform_indices = @transform_3, window_bounds = array<i64: 2, 256, 128>}]} {
    %c0 = arith.constant 0 : index
    %c0_0 = arith.constant 0 : index
    %c0_1 = arith.constant 0 : index
    %0 = vector.load %arg1[%c0, %c0_0, %c0_1] : memref<2x256x128xbf16, #tpu.memory_space<vmem>>, vector<2x256x128xbf16>
    %1 = arith.extf %0 : vector<2x256x128xbf16> to vector<2x256x128xf32>
    %c0_2 = arith.constant 0 : index
    %c0_3 = arith.constant 0 : index
    %c0_4 = arith.constant 0 : index
    %2 = vector.load %arg2[%c0_2, %c0_3, %c0_4] : memref<1x1x128xf32, #tpu.memory_space<vmem>>, vector<1x1x128xf32>
    %3 = vector.broadcast %2 : vector<1x1x128xf32> to vector<2x256x128xf32>
    %4 = arith.mulf %1, %3 : vector<2x256x128xf32>
    %c0_5 = arith.constant 0 : index
    %c0_6 = arith.constant 0 : index
    %c0_7 = arith.constant 0 : index
    %5 = vector.load %arg3[%c0_5, %c0_6, %c0_7] : memref<1x1x128xf32, #tpu.memory_space<vmem>>, vector<1x1x128xf32>
    %6 = vector.broadcast %5 : vector<1x1x128xf32> to vector<2x256x128xf32>
    %7 = arith.addf %4, %6 : vector<2x256x128xf32>
    %cst = arith.constant 0.000000e+00 : f32
    %8 = vector.broadcast %cst : f32 to vector<2x256x128xf32>
    %9 = arith.maximumf %7, %8 : vector<2x256x128xf32>
    %c0_8 = arith.constant 0 : index
    %c0_9 = arith.constant 0 : index
    %c0_10 = arith.constant 0 : index
    %10 = vector.load %arg4[%c0_8, %c0_9, %c0_10] : memref<2x256x128xf32, #tpu.memory_space<vmem>>, vector<2x256x128xf32>
    tpu.vector_store %arg4[%c0_8, %c0_9, %c0_10], %9 {strides = array<i32>} : memref<2x256x128xf32, #tpu.memory_space<vmem>>, vector<2x256x128xf32>,
    return
  }
  func.func @transform_0(%arg0: i32) -> (i32, i32, i32) {
    %c0_i32 = arith.constant 0 : i32
    %c0_i32_0 = arith.constant 0 : i32
    %c0_i32_1 = arith.constant 0 : i32
    return %arg0, %c0_i32, %c0_i32_0 : i32, i32, i32
  }
  func.func @transform_1(%arg0: i32) -> (i32, i32, i32) {
    %c0_i32 = arith.constant 0 : i32
    %c0_i32_0 = arith.constant 0 : i32
    %c0_i32_1 = arith.constant 0 : i32
    %c0_i32_2 = arith.constant 0 : i32
    return %c0_i32, %c0_i32_0, %c0_i32_1 : i32, i32, i32
  }
  func.func @transform_2(%arg0: i32) -> (i32, i32, i32) {
    %c0_i32 = arith.constant 0 : i32
    %c0_i32_0 = arith.constant 0 : i32
    %c0_i32_1 = arith.constant 0 : i32
    %c0_i32_2 = arith.constant 0 : i32
    return %c0_i32, %c0_i32_0, %c0_i32_1 : i32, i32, i32
  }
  func.func @transform_3(%arg0: i32) -> (i32, i32, i32) {
    %c0_i32 = arith.constant 0 : i32
    %c0_i32_0 = arith.constant 0 : i32
    %c0_i32_1 = arith.constant 0 : i32
    return %arg0, %c0_i32, %c0_i32_0 : i32, i32, i32
  }
}

</mosaic_0001>

<llo_original>
// kernel: conv_block1_forward.5
$region0: #{conv_block1_forward.5}
  #allocation0 [shape = 'u32[]', space=smem, size = 0x4, offset = 0x4, fixed_abs, tag = 'smem constant byte address 0x4 - core index']
  #allocation1 [shape = 'u32[144,128]{1,0:T(1,128)}', space=vmem, size = 0x12000, scoped, tag = 'internal scratch']
  %s0 = inlined_call_operand.vmem [shape: bf16[2,256,128], index: 0, kind: input, shape index: {}]
  %s1 = inlined_call_operand.vmem [shape: f32[1,1,128], index: 1, kind: input, shape index: {}]
  %s2 = inlined_call_operand.vmem [shape: f32[1,1,128], index: 2, kind: input, shape index: {}]
  %s3 = inlined_call_operand.vmem [shape: f32[2,256,128], index: 3, kind: output, shape index: {}]
  %s4 = sld [smem:[#allocation0]]
  $region22: #{conv_block1_forward.5} parent=0
    _
  %s6 = ssub.s32 1, %s4
  %s7 = scalar_select 0, %s6, %s4
  // Predicated region
  $region2: #{conv_block1_forward.5} parent=0 // pred_check
    _
  $region3: #{conv_block1_forward.5} parent=0 // pred_check_branch
    %9 = sbr.rel (0) target = $region5
  $region4: #{conv_block1_forward.5} parent=0 // pred_region
    _
  $region5: #{conv_block1_forward.5} parent=0 // pred_fallthru
    _
  // Predicated region
  $region6: #{conv_block1_forward.5} parent=0 // pred_check
    _
  $region7: #{conv_block1_forward.5} parent=0 // pred_check_branch
    %11 = sbr.rel (0) target = $region9
  $region8: #{conv_block1_forward.5} parent=0 // pred_region
    _
  $region9: #{conv_block1_forward.5} parent=0 // pred_fallthru
    _
  // Predicated region
  $region10: #{conv_block1_forward.5} parent=0 // pred_check
    _
  $region11: #{conv_block1_forward.5} parent=0 // pred_check_branch
    %13 = sbr.rel (0) target = $region13
  $region12: #{conv_block1_forward.5} parent=0 // pred_region
    _
  $region13: #{conv_block1_forward.5} parent=0 // pred_fallthru
    _
  %v14 = vld [vmem:[%s0] sm:$0xf]
  %v15 = vld [vmem:[%s0 + $0x4] sm:$0xf]
  %v16 = vld [vmem:[%s0 + $0x8] sm:$0xf]
  %v17 = vld [vmem:[%s0 + $0xc] sm:$0xf]
  %v18 = vld [vmem:[%s0 + $0x10] sm:$0xf]
  %v19 = vld [vmem:[%s0 + $0x14] sm:$0xf]
  %v20 = vld [vmem:[%s0 + $0x18] sm:$0xf]
  %v21 = vld [vmem:[%s0 + $0x1c] sm:$0xf]
  %v22 = vld [vmem:[%s0 + $0x20] sm:$0xf]
  %v23 = vld [vmem:[%s0 + $0x24] sm:$0xf]
  %v24 = vld [vmem:[%s0 + $0x28] sm:$0xf]
  %v25 = vld [vmem:[%s0 + $0x2c] sm:$0xf]
  %v26 = vld [vmem:[%s0 + $0x30] sm:$0xf]
  %v27 = vld [vmem:[%s0 + $0x34] sm:$0xf]
  %v28 = vld [vmem:[%s0 + $0x38] sm:$0xf]
  %v29 = vld [vmem:[%s0 + $0x3c] sm:$0xf]
  %v30 = vld [vmem:[%s0 + $0x40] sm:$0xf]
  %v31 = vld [vmem:[%s0 + $0x44] sm:$0xf]
  %v32 = vld [vmem:[%s0 + $0x48] sm:$0xf]
  %v33 = vld [vmem:[%s0 + $0x4c] sm:$0xf]
  %v34 = vld [vmem:[%s0 + $0x50] sm:$0xf]
  %v35 = vld [vmem:[%s0 + $0x54] sm:$0xf]
  %v36 = vld [vmem:[%s0 + $0x58] sm:$0xf]
  %v37 = vld [vmem:[%s0 + $0x5c] sm:$0xf]
  %v38 = vld [vmem:[%s0 + $0x60] sm:$0xf]
  %v39 = vld [vmem:[%s0 + $0x64] sm:$0xf]
  %v40 = vld [vmem:[%s0 + $0x68] sm:$0xf]
  %v41 = vld [vmem:[%s0 + $0x6c] sm:$0xf]
  %v42 = vld [vmem:[%s0 + $0x70] sm:$0xf]
  %v43 = vld [vmem:[%s0 + $0x74] sm:$0xf]
  %v44 = vld [vmem:[%s0 + $0x78] sm:$0xf]
  %v45 = vld [vmem:[%s0 + $0x7c] sm:$0xf]
  %v46 = vld [vmem:[%s0 + $0x80] sm:$0xf]
  %v47 = vld [vmem:[%s0 + $0x84] sm:$0xf]
  %v48 = vld [vmem:[%s0 + $0x88] sm:$0xf]
  %v49 = vld [vmem:[%s0 + $0x8c] sm:$0xf]
  %v50 = vld [vmem:[%s0 + $0x90] sm:$0xf]
  %v51 = vld [vmem:[%s0 + $0x94] sm:$0xf]
  %v52 = vld [vmem:[%s0 + $0x98] sm:$0xf]
  %v53 = vld [vmem:[%s0 + $0x9c] sm:$0xf]
  %v54 = vld [vmem:[%s0 + $0xa0] sm:$0xf]
  %v55 = vld [vmem:[%s0 + $0xa4] sm:$0xf]
  %v56 = vld [vmem:[%s0 + $0xa8] sm:$0xf]
  %v57 = vld [vmem:[%s0 + $0xac] sm:$0xf]
  %v58 = vld [vmem:[%s0 + $0xb0] sm:$0xf]
  %v59 = vld [vmem:[%s0 + $0xb4] sm:$0xf]
  %v60 = vld [vmem:[%s0 + $0xb8] sm:$0xf]
  %v61 = vld [vmem:[%s0 + $0xbc] sm:$0xf]
  %v62 = vld [vmem:[%s0 + $0xc0] sm:$0xf]
  %v63 = vld [vmem:[%s0 + $0xc4] sm:$0xf]
  %v64 = vld [vmem:[%s0 + $0xc8] sm:$0xf]
  %v65 = vld [vmem:[%s0 + $0xcc] sm:$0xf]
  %v66 = vld [vmem:[%s0 + $0xd0] sm:$0xf]
  %v67 = vld [vmem:[%s0 + $0xd4] sm:$0xf]
  %v68 = vld [vmem:[%s0 + $0xd8] sm:$0xf]
  %v69 = vld [vmem:[%s0 + $0xdc] sm:$0xf]
  %v70 = vld [vmem:[%s0 + $0xe0] sm:$0xf]
  %v71 = vld [vmem:[%s0 + $0xe4] sm:$0xf]
  %v72 = vld [vmem:[%s0 + $0xe8] sm:$0xf]
  %v73 = vld [vmem:[%s0 + $0xec] sm:$0xf]
  %v74 = vld [vmem:[%s0 + $0xf0] sm:$0xf]
  %v75 = vld [vmem:[%s0 + $0xf4] sm:$0xf]
  %v76 = vld [vmem:[%s0 + $0xf8] sm:$0xf]
  %v77 = vld [vmem:[%s0 + $0xfc] sm:$0xf]
  %v78 = vunpack.c.l.bf16 %v14
  %v79 = vunpack.c.l.bf16 %v15
  %v80 = vunpack.c.l.bf16 %v16
  %v81 = vunpack.c.l.bf16 %v17
  %v82 = vunpack.c.l.bf16 %v18
  %v83 = vunpack.c.l.bf16 %v19
  %v84 = vunpack.c.l.bf16 %v20
  %v85 = vunpack.c.l.bf16 %v21
  %v86 = vunpack.c.l.bf16 %v22
  %v87 = vunpack.c.l.bf16 %v23
  %v88 = vunpack.c.l.bf16 %v24
  %v89 = vunpack.c.l.bf16 %v25
  %v90 = vunpack.c.l.bf16 %v26
  %v91 = vunpack.c.l.bf16 %v27
  %v92 = vunpack.c.l.bf16 %v28
  %v93 = vunpack.c.l.bf16 %v29
  %v94 = vunpack.c.l.bf16 %v30
  %v95 = vunpack.c.l.bf16 %v31
  %v96 = vunpack.c.l.bf16 %v32
  %v97 = vunpack.c.l.bf16 %v33
  %v98 = vunpack.c.l.bf16 %v34
  %v99 = vunpack.c.l.bf16 %v35
  %v100 = vunpack.c.l.bf16 %v36
  %v101 = vunpack.c.l.bf16 %v37
  %v102 = vunpack.c.l.bf16 %v38
  %v103 = vunpack.c.l.bf16 %v39
  %v104 = vunpack.c.l.bf16 %v40
  %v105 = vunpack.c.l.bf16 %v41
  %v106 = vunpack.c.l.bf16 %v42
  %v107 = vunpack.c.l.bf16 %v43
  %v108 = vunpack.c.l.bf16 %v44
  %v109 = vunpack.c.l.bf16 %v45
  %v110 = vunpack.c.l.bf16 %v46
  %v111 = vunpack.c.l.bf16 %v47
  %v112 = vunpack.c.l.bf16 %v48
  %v113 = vunpack.c.l.bf16 %v49
  %v114 = vunpack.c.l.bf16 %v50
  %v115 = vunpack.c.l.bf16 %v51
  %v116 = vunpack.c.l.bf16 %v52
  %v117 = vunpack.c.l.bf16 %v53
  %v118 = vunpack.c.l.bf16 %v54
  %v119 = vunpack.c.l.bf16 %v55
  %v120 = vunpack.c.l.bf16 %v56
  %v121 = vunpack.c.l.bf16 %v57
  %v122 = vunpack.c.l.bf16 %v58
  %v123 = vunpack.c.l.bf16 %v59
  %v124 = vunpack.c.l.bf16 %v60
  %v125 = vunpack.c.l.bf16 %v61
  %v126 = vunpack.c.l.bf16 %v62
  %v127 = vunpack.c.l.bf16 %v63
  %v128 = vunpack.c.l.bf16 %v64
  %v129 = vunpack.c.l.bf16 %v65
  %v130 = vunpack.c.l.bf16 %v66
  %v131 = vunpack.c.l.bf16 %v67
  %v132 = vunpack.c.l.bf16 %v68
  %v133 = vunpack.c.l.bf16 %v69
  %v134 = vunpack.c.l.bf16 %v70
  %v135 = vunpack.c.l.bf16 %v71
  %v136 = vunpack.c.l.bf16 %v72
  %v137 = vunpack.c.l.bf16 %v73
  %v138 = vunpack.c.l.bf16 %v74
  %v139 = vunpack.c.l.bf16 %v75
  %v140 = vunpack.c.l.bf16 %v76
  %v141 = vunpack.c.l.bf16 %v77
  %v142 = vld [vmem:[%s1] sm:$0x1]
  %v144 = vlaneseq
  %v145 = vshrl.u32 %v144, 7
  %v146 = vsub.s32 0, %v145
  %v147 = vrot.slane %v142, %v146
  %v149 = vmul.f32 %v78, %v147
  %v150 = vmul.f32 %v79, %v147
  %v151 = vmul.f32 %v80, %v147
  %v152 = vmul.f32 %v81, %v147
  %v153 = vmul.f32 %v82, %v147
  %v154 = vmul.f32 %v83, %v147
  %v155 = vmul.f32 %v84, %v147
  %v156 = vmul.f32 %v85, %v147
  %v157 = vmul.f32 %v86, %v147
  %v158 = vmul.f32 %v87, %v147
  %v159 = vmul.f32 %v88, %v147
  %v160 = vmul.f32 %v89, %v147
  %v161 = vmul.f32 %v90, %v147
  %v162 = vmul.f32 %v91, %v147
  %v163 = vmul.f32 %v92, %v147
  %v164 = vmul.f32 %v93, %v147
  %v165 = vmul.f32 %v94, %v147
  %v166 = vmul.f32 %v95, %v147
  %v167 = vmul.f32 %v96, %v147
  %v168 = vmul.f32 %v97, %v147
  %v169 = vmul.f32 %v98, %v147
  %v170 = vmul.f32 %v99, %v147
  %v171 = vmul.f32 %v100, %v147
  %v172 = vmul.f32 %v101, %v147
  %v173 = vmul.f32 %v102, %v147
  %v174 = vmul.f32 %v103, %v147
  %v175 = vmul.f32 %v104, %v147
  %v176 = vmul.f32 %v105, %v147
  %v177 = vmul.f32 %v106, %v147
  %v178 = vmul.f32 %v107, %v147
  %v179 = vmul.f32 %v108, %v147
  %v180 = vmul.f32 %v109, %v147
  %v181 = vmul.f32 %v110, %v147
  %v182 = vmul.f32 %v111, %v147
  %v183 = vmul.f32 %v112, %v147
  %v184 = vmul.f32 %v113, %v147
  %v185 = vmul.f32 %v114, %v147
  %v186 = vmul.f32 %v115, %v147
  %v187 = vmul.f32 %v116, %v147
  %v188 = vmul.f32 %v117, %v147
  %v189 = vmul.f32 %v118, %v147
  %v190 = vmul.f32 %v119, %v147
  %v191 = vmul.f32 %v120, %v147
  %v192 = vmul.f32 %v121, %v147
  %v193 = vmul.f32 %v122, %v147
  %v194 = vmul.f32 %v123, %v147
  %v195 = vmul.f32 %v124, %v147
  %v196 = vmul.f32 %v125, %v147
  %v197 = vmul.f32 %v126, %v147
  %v198 = vmul.f32 %v127, %v147
  %v199 = vmul.f32 %v128, %v147
  %v200 = vmul.f32 %v129, %v147
  %v201 = vmul.f32 %v130, %v147
  %v202 = vmul.f32 %v131, %v147
  %v203 = vmul.f32 %v132, %v147
  %v204 = vmul.f32 %v133, %v147
  %v205 = vmul.f32 %v134, %v147
  %v206 = vmul.f32 %v135, %v147
  %v207 = vmul.f32 %v136, %v147
  %v208 = vmul.f32 %v137, %v147
  %v209 = vmul.f32 %v138, %v147
  %v210 = vmul.f32 %v139, %v147
  %v211 = vmul.f32 %v140, %v147
  %v212 = vmul.f32 %v141, %v147
  %v213 = vld [vmem:[%s2] sm:$0x1]
  %v215 = vlaneseq
  %v216 = vshrl.u32 %v215, 7
  %v217 = vsub.s32 0, %v216
  %v218 = vrot.slane %v213, %v217
  %v220 = vadd.f32 %v149, %v218
  %v221 = vadd.f32 %v150, %v218
  %v222 = vadd.f32 %v151, %v218
  %v223 = vadd.f32 %v152, %v218
  %v224 = vadd.f32 %v153, %v218
  %v225 = vadd.f32 %v154, %v218
  %v226 = vadd.f32 %v155, %v218
  %v227 = vadd.f32 %v156, %v218
  %v228 = vadd.f32 %v157, %v218
  %v229 = vadd.f32 %v158, %v218
  %v230 = vadd.f32 %v159, %v218
  %v231 = vadd.f32 %v160, %v218
  %v232 = vadd.f32 %v161, %v218
  %v233 = vadd.f32 %v162, %v218
  %v234 = vadd.f32 %v163, %v218
  %v235 = vadd.f32 %v164, %v218
  %v236 = vadd.f32 %v165, %v218
  %v237 = vadd.f32 %v166, %v218
  %v238 = vadd.f32 %v167, %v218
  %v239 = vadd.f32 %v168, %v218
  %v240 = vadd.f32 %v169, %v218
  %v241 = vadd.f32 %v170, %v218
  %v242 = vadd.f32 %v171, %v218
  %v243 = vadd.f32 %v172, %v218
  %v244 = vadd.f32 %v173, %v218
  %v245 = vadd.f32 %v174, %v218
  %v246 = vadd.f32 %v175, %v218
  %v247 = vadd.f32 %v176, %v218
  %v248 = vadd.f32 %v177, %v218
  %v249 = vadd.f32 %v178, %v218
  %v250 = vadd.f32 %v179, %v218
  %v251 = vadd.f32 %v180, %v218
  %v252 = vadd.f32 %v181, %v218
  %v253 = vadd.f32 %v182, %v218
  %v254 = vadd.f32 %v183, %v218
  %v255 = vadd.f32 %v184, %v218
  %v256 = vadd.f32 %v185, %v218
  %v257 = vadd.f32 %v186, %v218
  %v258 = vadd.f32 %v187, %v218
  %v259 = vadd.f32 %v188, %v218
  %v260 = vadd.f32 %v189, %v218
  %v261 = vadd.f32 %v190, %v218
  %v262 = vadd.f32 %v191, %v218
  %v263 = vadd.f32 %v192, %v218
  %v264 = vadd.f32 %v193, %v218
  %v265 = vadd.f32 %v194, %v218
  %v266 = vadd.f32 %v195, %v218
  %v267 = vadd.f32 %v196, %v218
  %v268 = vadd.f32 %v197, %v218
  %v269 = vadd.f32 %v198, %v218
  %v270 = vadd.f32 %v199, %v218
  %v271 = vadd.f32 %v200, %v218
  %v272 = vadd.f32 %v201, %v218
  %v273 = vadd.f32 %v202, %v218
  %v274 = vadd.f32 %v203, %v218
  %v275 = vadd.f32 %v204, %v218
  %v276 = vadd.f32 %v205, %v218
  %v277 = vadd.f32 %v206, %v218
  %v278 = vadd.f32 %v207, %v218
  %v279 = vadd.f32 %v208, %v218
  %v280 = vadd.f32 %v209, %v218
  %v281 = vadd.f32 %v210, %v218
  %v282 = vadd.f32 %v211, %v218
  %v283 = vadd.f32 %v212, %v218
  %v284 = vmax.f32 %v220, 0.0
  %v285 = vmax.f32 %v221, 0.0
  %v286 = vmax.f32 %v222, 0.0
  %v287 = vmax.f32 %v223, 0.0
  %v288 = vmax.f32 %v224, 0.0
  %v289 = vmax.f32 %v225, 0.0
  %v290 = vmax.f32 %v226, 0.0
  %v291 = vmax.f32 %v227, 0.0
  %v292 = vmax.f32 %v228, 0.0
  %v293 = vmax.f32 %v229, 0.0
  %v294 = vmax.f32 %v230, 0.0
  %v295 = vmax.f32 %v231, 0.0
  %v296 = vmax.f32 %v232, 0.0
  %v297 = vmax.f32 %v233, 0.0
  %v298 = vmax.f32 %v234, 0.0
  %v299 = vmax.f32 %v235, 0.0
  %v300 = vmax.f32 %v236, 0.0
  %v301 = vmax.f32 %v237, 0.0
  %v302 = vmax.f32 %v238, 0.0
  %v303 = vmax.f32 %v239, 0.0
  %v304 = vmax.f32 %v240, 0.0
  %v305 = vmax.f32 %v241, 0.0
  %v306 = vmax.f32 %v242, 0.0
  %v307 = vmax.f32 %v243, 0.0
  %v308 = vmax.f32 %v244, 0.0
  %v309 = vmax.f32 %v245, 0.0
  %v310 = vmax.f32 %v246, 0.0
  %v311 = vmax.f32 %v247, 0.0
  %v312 = vmax.f32 %v248, 0.0
  %v313 = vmax.f32 %v249, 0.0
  %v314 = vmax.f32 %v250, 0.0
  %v315 = vmax.f32 %v251, 0.0
  %v316 = vmax.f32 %v252, 0.0
  %v317 = vmax.f32 %v253, 0.0
  %v318 = vmax.f32 %v254, 0.0
  %v319 = vmax.f32 %v255, 0.0
  %v320 = vmax.f32 %v256, 0.0
  %v321 = vmax.f32 %v257, 0.0
  %v322 = vmax.f32 %v258, 0.0
  %v323 = vmax.f32 %v259, 0.0
  %v324 = vmax.f32 %v260, 0.0
  %v325 = vmax.f32 %v261, 0.0
  %v326 = vmax.f32 %v262, 0.0
  %v327 = vmax.f32 %v263, 0.0
  %v328 = vmax.f32 %v264, 0.0
  %v329 = vmax.f32 %v265, 0.0
  %v330 = vmax.f32 %v266, 0.0
  %v331 = vmax.f32 %v267, 0.0
  %v332 = vmax.f32 %v268, 0.0
  %v333 = vmax.f32 %v269, 0.0
  %v334 = vmax.f32 %v270, 0.0
  %v335 = vmax.f32 %v271, 0.0
  %v336 = vmax.f32 %v272, 0.0
  %v337 = vmax.f32 %v273, 0.0
  %v338 = vmax.f32 %v274, 0.0
  %v339 = vmax.f32 %v275, 0.0
  %v340 = vmax.f32 %v276, 0.0
  %v341 = vmax.f32 %v277, 0.0
  %v342 = vmax.f32 %v278, 0.0
  %v343 = vmax.f32 %v279, 0.0
  %v344 = vmax.f32 %v280, 0.0
  %v345 = vmax.f32 %v281, 0.0
  %v346 = vmax.f32 %v282, 0.0
  %v347 = vmax.f32 %v283, 0.0
  %348 = vst [vmem:[%s3] sm:$0xff] %v284
  %349 = vst [vmem:[%s3 + $0x8] sm:$0xff] %v285
  %350 = vst [vmem:[%s3 + $0x10] sm:$0xff] %v286
  %351 = vst [vmem:[%s3 + $0x18] sm:$0xff] %v287
  %352 = vst [vmem:[%s3 + $0x20] sm:$0xff] %v288
  %353 = vst [vmem:[%s3 + $0x28] sm:$0xff] %v289
  %354 = vst [vmem:[%s3 + $0x30] sm:$0xff] %v290
  %355 = vst [vmem:[%s3 + $0x38] sm:$0xff] %v291
  %356 = vst [vmem:[%s3 + $0x40] sm:$0xff] %v292
  %357 = vst [vmem:[%s3 + $0x48] sm:$0xff] %v293
  %358 = vst [vmem:[%s3 + $0x50] sm:$0xff] %v294
  %359 = vst [vmem:[%s3 + $0x58] sm:$0xff] %v295
  %360 = vst [vmem:[%s3 + $0x60] sm:$0xff] %v296
  %361 = vst [vmem:[%s3 + $0x68] sm:$0xff] %v297
  %362 = vst [vmem:[%s3 + $0x70] sm:$0xff] %v298
  %363 = vst [vmem:[%s3 + $0x78] sm:$0xff] %v299
  %364 = vst [vmem:[%s3 + $0x80] sm:$0xff] %v300
  %365 = vst [vmem:[%s3 + $0x88] sm:$0xff] %v301
  %366 = vst [vmem:[%s3 + $0x90] sm:$0xff] %v302
  %367 = vst [vmem:[%s3 + $0x98] sm:$0xff] %v303
  %368 = vst [vmem:[%s3 + $0xa0] sm:$0xff] %v304
  %369 = vst [vmem:[%s3 + $0xa8] sm:$0xff] %v305
  %370 = vst [vmem:[%s3 + $0xb0] sm:$0xff] %v306
  %371 = vst [vmem:[%s3 + $0xb8] sm:$0xff] %v307
  %372 = vst [vmem:[%s3 + $0xc0] sm:$0xff] %v308
  %373 = vst [vmem:[%s3 + $0xc8] sm:$0xff] %v309
  %374 = vst [vmem:[%s3 + $0xd0] sm:$0xff] %v310
  %375 = vst [vmem:[%s3 + $0xd8] sm:$0xff] %v311
  %376 = vst [vmem:[%s3 + $0xe0] sm:$0xff] %v312
  %377 = vst [vmem:[%s3 + $0xe8] sm:$0xff] %v313
  %378 = vst [vmem:[%s3 + $0xf0] sm:$0xff] %v314
  %379 = vst [vmem:[%s3 + $0xf8] sm:$0xff] %v315
  %380 = vst [vmem:[%s3 + $0x100] sm:$0xff] %v316
  %381 = vst [vmem:[%s3 + $0x108] sm:$0xff] %v317
  %382 = vst [vmem:[%s3 + $0x110] sm:$0xff] %v318
  %383 = vst [vmem:[%s3 + $0x118] sm:$0xff] %v319
  %384 = vst [vmem:[%s3 + $0x120] sm:$0xff] %v320
  %385 = vst [vmem:[%s3 + $0x128] sm:$0xff] %v321
  %386 = vst [vmem:[%s3 + $0x130] sm:$0xff] %v322
  %387 = vst [vmem:[%s3 + $0x138] sm:$0xff] %v323
  %388 = vst [vmem:[%s3 + $0x140] sm:$0xff] %v324
  %389 = vst [vmem:[%s3 + $0x148] sm:$0xff] %v325
  %390 = vst [vmem:[%s3 + $0x150] sm:$0xff] %v326
  %391 = vst [vmem:[%s3 + $0x158] sm:$0xff] %v327
  %392 = vst [vmem:[%s3 + $0x160] sm:$0xff] %v328
  %393 = vst [vmem:[%s3 + $0x168] sm:$0xff] %v329
  %394 = vst [vmem:[%s3 + $0x170] sm:$0xff] %v330
  %395 = vst [vmem:[%s3 + $0x178] sm:$0xff] %v331
  %396 = vst [vmem:[%s3 + $0x180] sm:$0xff] %v332
  %397 = vst [vmem:[%s3 + $0x188] sm:$0xff] %v333
  %398 = vst [vmem:[%s3 + $0x190] sm:$0xff] %v334
  %399 = vst [vmem:[%s3 + $0x198] sm:$0xff] %v335
  %400 = vst [vmem:[%s3 + $0x1a0] sm:$0xff] %v336
  %401 = vst [vmem:[%s3 + $0x1a8] sm:$0xff] %v337
  %402 = vst [vmem:[%s3 + $0x1b0] sm:$0xff] %v338
  %403 = vst [vmem:[%s3 + $0x1b8] sm:$0xff] %v339
  %404 = vst [vmem:[%s3 + $0x1c0] sm:$0xff] %v340
  %405 = vst [vmem:[%s3 + $0x1c8] sm:$0xff] %v341
  %406 = vst [vmem:[%s3 + $0x1d0] sm:$0xff] %v342
  %407 = vst [vmem:[%s3 + $0x1d8] sm:$0xff] %v343
  %408 = vst [vmem:[%s3 + $0x1e0] sm:$0xff] %v344
  %409 = vst [vmem:[%s3 + $0x1e8] sm:$0xff] %v345
  %410 = vst [vmem:[%s3 + $0x1f0] sm:$0xff] %v346
  %411 = vst [vmem:[%s3 + $0x1f8] sm:$0xff] %v347
  // Predicated region
  $region14: #{conv_block1_forward.5} parent=0 // pred_check
    _
  $region15: #{conv_block1_forward.5} parent=0 // pred_check_branch
    %413 = sbr.rel (0) target = $region17
  $region16: #{conv_block1_forward.5} parent=0 // pred_region
    _
  $region17: #{conv_block1_forward.5} parent=0 // pred_fallthru
    _
  // Predicated region
  $region18: #{conv_block1_forward.5} parent=0 // pred_check
    _
  $region19: #{conv_block1_forward.5} parent=0 // pred_check_branch
    %415 = sbr.rel (0) target = $region21
  $region20: #{conv_block1_forward.5} parent=0 // pred_region
    _
  $region21: #{conv_block1_forward.5} parent=0 // pred_fallthru
    _

// kernel: conv_block1_forward.3
$region0: #{conv_block1_forward.3}
  #allocation0 [shape = 'u32[]', space=smem, size = 0x4, offset = 0x4, fixed_abs, tag = 'smem constant byte address 0x4 - core index']
  #allocation1 [shape = 'u32[144,128]{1,0:T(1,128)}', space=vmem, size = 0x12000, scoped, tag = 'internal scratch']
  #allocation2 [shape = 'bf16[256,128]{1,0:T(16,128)(2,1)}', space=vmem, size = 0x10000, scoped, tag = 'scratch operand']
  %s0 = inlined_call_operand.vmem [shape: bf16[2,18,18,8], index: 0, kind: input, shape index: {}]
  %s1 = inlined_call_operand.vmem [shape: bf16[128,128], index: 1, kind: input, shape index: {}]
  %s2 = inlined_call_operand.vmem [shape: bf16[2,256,128], index: 2, kind: output, shape index: {0}]
  %s3 = inlined_call_operand.vmem [shape: f32[2,8,128], index: 3, kind: output, shape index: {1}]
  %4 = xla_tuple %s2, %s3
  %s5 = sld [smem:[#allocation0]]
  $region49: #{conv_block1_forward.3} parent=0
    _
  %s7 = ssub.s32 1, %s5
  %s8 = scalar_select 0, %s7, %s5
  loop: start=0, step=1, limit=4
  $region2: #{conv_block1_forward.3} parent=0 // loop_pre_header
    _
  $region3: #{conv_block1_forward.3} parent=0 // loop_header
    %s10 = sphi 0, %s14
    %p11 = scmp.ge.s32.totalorder %s10, 4
    %s20 = sphi 0, %s22
    %s23 = sphi 0, %s20
    %s24 = sphi 0, %s23
    %s40 = sphi 0, %s24
    %s44 = sphi 0, %s44
    %s46 = sphi 0, %s44
    %s47 = sphi 0, %s46
    %s61 = sphi 0, %s47
    %s67 = sphi 0, %s69
    %s70 = sphi 0, %s67
    %s71 = sphi 0, %s70
    %s87 = sphi 0, %s71
    %s93 = sphi 0, %s95
    %s96 = sphi 0, %s93
    %s97 = sphi 0, %s96
    %s113 = sphi 0, %s97
  $region4: #{conv_block1_forward.3} parent=0 // loop_header_branch
    %13 = sbr.rel (%p11) target = $region8
  $region5: #{conv_block1_forward.3} parent=0 // loop_body
    %s15 = ssub.s32 %s10, 1
    %s16 = ssub.s32 %s10, 2
    %s17 = sadd.s32 %s10, 1
    %s18 = ssub.s32 %s10, %s17
    %p19 = scmp.eq.s32.totalorder %s18, 0
    %s21 = sadd.s32 %s20, 1
    %s22 = scalar_select %p19, %s20, %s21
    %p25 = pneg %p19
    %p26 = scmp.eq.s32.totalorder %s10, 1
    %p27 = por %p25, %p26
    %p28 = scmp.ne.s32.totalorder %s20, %s23
    %p29 = scmp.eq.s32.totalorder %s10, 0
    %p30 = por %p28, %p29
    %p31 = scmp.ne.s32.totalorder %s20, %s23
    %p32 = scmp.eq.s32.totalorder %s15, 1
    %p33 = por %p31, %p32
    %p34 = scmp.ne.s32.totalorder %s23, %s24
    %p35 = scmp.eq.s32.totalorder %s15, 0
    %p36 = por %p34, %p35
    %p37 = scmp.ne.s32.totalorder %s23, %s24
    %p38 = scmp.eq.s32.totalorder %s16, 1
    %p39 = por %p37, %p38
    %p41 = scmp.ne.s32.totalorder %s24, %s40
    %p42 = scmp.eq.s32.totalorder %s16, 0
    %p43 = por %p41, %p42
    %s45 = sadd.s32 %s44, 1
    %p48 = scmp.eq.s32.totalorder %s10, 1
    %p49 = scmp.ne.s32.totalorder %s44, %s46
    %p50 = scmp.eq.s32.totalorder %s10, 0
    %p51 = por %p49, %p50
    %p52 = scmp.ne.s32.totalorder %s44, %s46
    %p53 = scmp.eq.s32.totalorder %s15, 1
    %p54 = por %p52, %p53
    %p55 = scmp.ne.s32.totalorder %s46, %s47
    %p56 = scmp.eq.s32.totalorder %s15, 0
    %p57 = por %p55, %p56
    %p58 = scmp.ne.s32.totalorder %s46, %s47
    %p59 = scmp.eq.s32.totalorder %s16, 1
    %p60 = por %p58, %p59
    %p62 = scmp.ne.s32.totalorder %s47, %s61
    %p63 = scmp.eq.s32.totalorder %s16, 0
    %p64 = por %p62, %p63
    %s65 = ssub.s32 %s10, %s17
    %p66 = scmp.eq.s32.totalorder %s65, 0
    %s68 = sadd.s32 %s67, 1
    %s69 = scalar_select %p66, %s67, %s68
    %p72 = pneg %p66
    %p73 = scmp.eq.s32.totalorder %s10, 1
    %p74 = por %p72, %p73
    %p75 = scmp.ne.s32.totalorder %s67, %s70
    %p76 = scmp.eq.s32.totalorder %s10, 0
    %p77 = por %p75, %p76
    %p78 = scmp.ne.s32.totalorder %s67, %s70
    %p79 = scmp.eq.s32.totalorder %s15, 1
    %p80 = por %p78, %p79
    %p81 = scmp.ne.s32.totalorder %s70, %s71
    %p82 = scmp.eq.s32.totalorder %s15, 0
    %p83 = por %p81, %p82
    %p84 = scmp.ne.s32.totalorder %s70, %s71
    %p85 = scmp.eq.s32.totalorder %s16, 1
    %p86 = por %p84, %p85
    %p88 = scmp.ne.s32.totalorder %s71, %s87
    %p89 = scmp.eq.s32.totalorder %s16, 0
    %p90 = por %p88, %p89
    %s91 = ssub.s32 %s10, %s17
    %p92 = scmp.eq.s32.totalorder %s91, 0
    %s94 = sadd.s32 %s93, 1
    %s95 = scalar_select %p92, %s93, %s94
    %p98 = pneg %p92
    %p99 = scmp.eq.s32.totalorder %s10, 1
    %p100 = por %p98, %p99
    %p101 = scmp.ne.s32.totalorder %s93, %s96
    %p102 = scmp.eq.s32.totalorder %s10, 0
    %p103 = por %p101, %p102
    %p104 = scmp.ne.s32.totalorder %s93, %s96
    %p105 = scmp.eq.s32.totalorder %s15, 1
    %p106 = por %p104, %p105
    %p107 = scmp.ne.s32.totalorder %s96, %s97
    %p108 = scmp.eq.s32.totalorder %s15, 0
    %p109 = por %p107, %p108
    %p110 = scmp.ne.s32.totalorder %s96, %s97
    %p111 = scmp.eq.s32.totalorder %s16, 1
    %p112 = por %p110, %p111
    %p114 = scmp.ne.s32.totalorder %s97, %s113
    %p115 = scmp.eq.s32.totalorder %s16, 0
    %p116 = por %p114, %p115
    %p117 = scmp.le.s32.totalorder 1, %s10
    %p118 = scmp.lt.s32.totalorder %s10, 3
    %p119 = pnand %p117, %p118
    %p120 = pneg %p119
    // Predicated region
    $region9: #{conv_block1_forward.3} parent=5 // pred_check
      _
    $region10: #{conv_block1_forward.3} parent=5 // pred_check_branch
      %122 = sbr.rel (%p119) target = $region12
    $region11: #{conv_block1_forward.3} parent=5 // pred_region
      %s123 = ssub.s32 %s10, 1
      // Predicated region
      $region13: #{conv_block1_forward.3} parent=11 // pred_check
        %p124 = pneg %p57
      $region14: #{conv_block1_forward.3} parent=11 // pred_check_branch
        %126 = sbr.rel (%p124) target = $region16
      $region15: #{conv_block1_forward.3} parent=11 // pred_region
        _
      $region16: #{conv_block1_forward.3} parent=11 // pred_fallthru
        _
    $region12: #{conv_block1_forward.3} parent=5 // pred_fallthru
      _
    %p127 = scmp.lt.s32.totalorder %s10, 2
    // Predicated region
    $region17: #{conv_block1_forward.3} parent=5 // pred_check
      %p128 = pneg %p127
    $region18: #{conv_block1_forward.3} parent=5 // pred_check_branch
      %130 = sbr.rel (%p128) target = $region20
    $region19: #{conv_block1_forward.3} parent=5 // pred_region
      // Predicated region
      $region21: #{conv_block1_forward.3} parent=19 // pred_check
        %p131 = pneg %p30
      $region22: #{conv_block1_forward.3} parent=19 // pred_check_branch
        %133 = sbr.rel (%p131) target = $region24
      $region23: #{conv_block1_forward.3} parent=19 // pred_region
        %p134 = scmp.lt.s32.totalorder %s10, 1
        %s135 = scalar_select %p134, %s10, 1
        %s136 = smul.addr %s135, 54
        %s137 = smul.addr %s136, 4
        %s138 = scalar_lea.vmem %s0, %s137
      $region24: #{conv_block1_forward.3} parent=19 // pred_fallthru
        _
    $region20: #{conv_block1_forward.3} parent=5 // pred_fallthru
      _
    %p139 = scmp.le.s32.totalorder 1, %s10
    %p140 = scmp.lt.s32.totalorder %s10, 3
    %p141 = pnand %p139, %p140
    %p142 = pneg %p141
    // Predicated region
    $region25: #{conv_block1_forward.3} parent=5 // pred_check
      _
    $region26: #{conv_block1_forward.3} parent=5 // pred_check_branch
      %144 = sbr.rel (%p141) target = $region28
    $region27: #{conv_block1_forward.3} parent=5 // pred_region
      %s145 = ssub.s32 %s10, 1
      %p146 = scmp.lt.s32.totalorder %s15, 1
      %s147 = scalar_select %p146, %s15, 1
      %s148 = smul.addr %s147, 54
      %s149 = smul.addr %s148, 4
      %s150 = scalar_lea.vmem %s0, %s149
      %p151 = pneg %p36
      %p152 = pneg %p33
      %p153 = pneg %p57
      %p154 = pneg %p54
      %p155 = pneg %p83
      %p156 = pneg %p80
      %p157 = scmp.lt.s32.totalorder %s15, 1
      %s158 = scalar_select %p157, %s15, 1
      %s159 = smul.addr %s158, 32
      %s160 = smul.addr %s159, 4
      %s161 = scalar_lea.vmem %s2, %s160
      %p162 = pneg %p109
      %p163 = pneg %p106
      %p164 = scmp.lt.s32.totalorder %s15, 1
      %s165 = scalar_select %p164, %s15, 1
      %s166 = smul.addr %s165, 8
      %s167 = scalar_lea.vmem %s3, %s166
      %p168 = scmp.lt.s32.totalorder %s15, 1
      %s169 = scalar_select %p168, %s15, 1
      %s170 = smul.addr %s169, 54
      %s171 = smul.addr %s170, 4
      %s172 = scalar_lea.vmem %s0, %s171
      %p173 = scmp.lt.s32.totalorder %s15, 1
      %s174 = scalar_select %p173, %s15, 1
      %s175 = smul.addr %s174, 32
      %s176 = smul.addr %s175, 4
      %s177 = scalar_lea.vmem %s2, %s176
      %p178 = scmp.lt.s32.totalorder %s15, 1
      %s179 = scalar_select %p178, %s15, 1
      %s180 = smul.addr %s179, 8
      %s181 = scalar_lea.vmem %s3, %s180
      %v183 = vld [vmem:[%s172] sm:$0xf]
      %v184 = vld [vmem:[%s172 + $0x4] sm:$0xf]
      %v185 = vld [vmem:[%s172 + $0x8] sm:$0x1]
      %v186 = vld [vmem:[%s172 + $0xc] sm:$0xf]
      %v187 = vld [vmem:[%s172 + $0x10] sm:$0xf]
      %v188 = vld [vmem:[%s172 + $0x14] sm:$0x1]
      %v189 = vld [vmem:[%s172 + $0x18] sm:$0xf]
      %v190 = vld [vmem:[%s172 + $0x1c] sm:$0xf]
      %v191 = vld [vmem:[%s172 + $0x20] sm:$0x1]
      %v192 = vld [vmem:[%s172 + $0x24] sm:$0xf]
      %v193 = vld [vmem:[%s172 + $0x28] sm:$0xf]
      %v194 = vld [vmem:[%s172 + $0x2c] sm:$0x1]
      %v195 = vld [vmem:[%s172 + $0x30] sm:$0xf]
      %v196 = vld [vmem:[%s172 + $0x34] sm:$0xf]
      %v197 = vld [vmem:[%s172 + $0x38] sm:$0x1]
      %v198 = vld [vmem:[%s172 + $0x3c] sm:$0xf]
      %v199 = vld [vmem:[%s172 + $0x40] sm:$0xf]
      %v200 = vld [vmem:[%s172 + $0x44] sm:$0x1]
      %v201 = vld [vmem:[%s172 + $0x48] sm:$0xf]
      %v202 = vld [vmem:[%s172 + $0x4c] sm:$0xf]
      %v203 = vld [vmem:[%s172 + $0x50] sm:$0x1]
      %v204 = vld [vmem:[%s172 + $0x54] sm:$0xf]
      %v205 = vld [vmem:[%s172 + $0x58] sm:$0xf]
      %v206 = vld [vmem:[%s172 + $0x5c] sm:$0x1]
      %v207 = vld [vmem:[%s172 + $0x60] sm:$0xf]
      %v208 = vld [vmem:[%s172 + $0x64] sm:$0xf]
      %v209 = vld [vmem:[%s172 + $0x68] sm:$0x1]
      %v210 = vld [vmem:[%s172 + $0x6c] sm:$0xf]
      %v211 = vld [vmem:[%s172 + $0x70] sm:$0xf]
      %v212 = vld [vmem:[%s172 + $0x74] sm:$0x1]
      %v213 = vld [vmem:[%s172 + $0x78] sm:$0xf]
      %v214 = vld [vmem:[%s172 + $0x7c] sm:$0xf]
      %v215 = vld [vmem:[%s172 + $0x80] sm:$0x1]
      %v216 = vld [vmem:[%s172 + $0x84] sm:$0xf]
      %v217 = vld [vmem:[%s172 + $0x88] sm:$0xf]
      %v218 = vld [vmem:[%s172 + $0x8c] sm:$0x1]
      %v219 = vld [vmem:[%s172 + $0x90] sm:$0xf]
      %v220 = vld [vmem:[%s172 + $0x94] sm:$0xf]
      %v221 = vld [vmem:[%s172 + $0x98] sm:$0x1]
      %v222 = vld [vmem:[%s172 + $0x9c] sm:$0xf]
      %v223 = vld [vmem:[%s172 + $0xa0] sm:$0xf]
      %v224 = vld [vmem:[%s172 + $0xa4] sm:$0x1]
      %v225 = vld [vmem:[%s172 + $0xa8] sm:$0xf]
      %v226 = vld [vmem:[%s172 + $0xac] sm:$0xf]
      %v227 = vld [vmem:[%s172 + $0xb0] sm:$0x1]
      %v228 = vld [vmem:[%s172 + $0xb4] sm:$0xf]
      %v229 = vld [vmem:[%s172 + $0xb8] sm:$0xf]
      %v230 = vld [vmem:[%s172 + $0xbc] sm:$0x1]
      %v231 = vld [vmem:[%s172 + $0xc0] sm:$0xf]
      %v232 = vld [vmem:[%s172 + $0xc4] sm:$0xf]
      %v233 = vld [vmem:[%s172 + $0xc8] sm:$0x1]
      %v234 = vld [vmem:[%s172 + $0xcc] sm:$0xf]
      %v235 = vld [vmem:[%s172 + $0xd0] sm:$0xf]
      %v236 = vld [vmem:[%s172 + $0xd4] sm:$0x1]
      %v269 = vunpack.c.l.b16 %v183
      %v270 = vunpack.c.l.b16 %v184
      %v271 = vunpack.c.l.b16 %v186
      %v272 = vunpack.c.l.b16 %v187
      %v273 = vunpack.c.l.b16 %v189
      %v274 = vunpack.c.l.b16 %v190
      %v275 = vunpack.c.l.b16 %v192
      %v276 = vunpack.c.l.b16 %v193
      %v277 = vunpack.c.l.b16 %v195
      %v278 = vunpack.c.l.b16 %v196
      %v279 = vunpack.c.l.b16 %v198
      %v280 = vunpack.c.l.b16 %v199
      %v281 = vunpack.c.l.b16 %v201
      %v282 = vunpack.c.l.b16 %v202
      %v283 = vunpack.c.l.b16 %v204
      %v284 = vunpack.c.l.b16 %v205
      %v285 = vunpack.c.l.b16 %v207
      %v286 = vunpack.c.l.b16 %v208
      %v287 = vunpack.c.l.b16 %v210
      %v288 = vunpack.c.l.b16 %v211
      %v289 = vunpack.c.l.b16 %v213
      %v290 = vunpack.c.l.b16 %v214
      %v291 = vunpack.c.l.b16 %v216
      %v292 = vunpack.c.l.b16 %v217
      %v293 = vunpack.c.l.b16 %v219
      %v294 = vunpack.c.l.b16 %v220
      %v295 = vunpack.c.l.b16 %v222
      %v296 = vunpack.c.l.b16 %v223
      %v297 = vunpack.c.l.b16 %v225
      %v298 = vunpack.c.l.b16 %v226
      %v299 = vunpack.c.l.b16 %v228
      %v300 = vunpack.c.l.b16 %v229
      %v301 = vpack.c.b16 %v270, %v269
      %v302 = vpack.c.b16 %v272, %v271
      %v303 = vpack.c.b16 %v274, %v273
      %v304 = vpack.c.b16 %v276, %v275
      %v305 = vpack.c.b16 %v278, %v277
      %v306 = vpack.c.b16 %v280, %v279
      %v307 = vpack.c.b16 %v282, %v281
      %v308 = vpack.c.b16 %v284, %v283
      %v309 = vpack.c.b16 %v286, %v285
      %v310 = vpack.c.b16 %v288, %v287
      %v311 = vpack.c.b16 %v290, %v289
      %v312 = vpack.c.b16 %v292, %v291
      %v313 = vpack.c.b16 %v294, %v293
      %v314 = vpack.c.b16 %v296, %v295
      %v315 = vpack.c.b16 %v298, %v297
      %v316 = vpack.c.b16 %v300, %v299
      %vm333 = vcmask 64512
      %334 = vst.msk [vmem:[#allocation2] sm:$0xff] %vm333, %v301
      %335 = vst.msk [vmem:[#allocation2 + $0x8] sm:$0xff] %vm333, %v302
      %336 = vst.msk [vmem:[#allocation2 + $0x10] sm:$0xff] %vm333, %v303
      %337 = vst.msk [vmem:[#allocation2 + $0x18] sm:$0xff] %vm333, %v304
      %338 = vst.msk [vmem:[#allocation2 + $0x20] sm:$0xff] %vm333, %v305
      %339 = vst.msk [vmem:[#allocation2 + $0x28] sm:$0xff] %vm333, %v306
      %340 = vst.msk [vmem:[#allocation2 + $0x30] sm:$0xff] %vm333, %v307
      %341 = vst.msk [vmem:[#allocation2 + $0x38] sm:$0xff] %vm333, %v308
      %342 = vst.msk [vmem:[#allocation2 + $0x40] sm:$0xff] %vm333, %v309
      %343 = vst.msk [vmem:[#allocation2 + $0x48] sm:$0xff] %vm333, %v310
      %344 = vst.msk [vmem:[#allocation2 + $0x50] sm:$0xff] %vm333, %v311
      %345 = vst.msk [vmem:[#allocation2 + $0x58] sm:$0xff] %vm333, %v312
      %346 = vst.msk [vmem:[#allocation2 + $0x60] sm:$0xff] %vm333, %v313
      %347 = vst.msk [vmem:[#allocation2 + $0x68] sm:$0xff] %vm333, %v314
      %348 = vst.msk [vmem:[#allocation2 + $0x70] sm:$0xff] %vm333, %v315
      %349 = vst.msk [vmem:[#allocation2 + $0x78] sm:$0xff] %vm333, %v316
      %vm350 = vsmask.f32 3328
      %vm351 = vsmask.f32 7440
      %vm352 = vmor %vm350, %vm351
      %v354 = vshrl.u32 %v183, 16
      %v356 = vrot.slane %v354, 4
      %v357 = vshll.u32 %v183, 16
      %v359 = vrot.slane %v357, 5
      %v360 = vor.u32 %v356, %v359
      %v361 = vrot.slane %v360, 4
      %v363 = vshll.u32 %v184, 16
      %v365 = vrot.slane %v363, 5
      %v366 = vsel %vm352, %v361, %v365
      %v367 = vshrl.u32 %v184, 16
      %v369 = vrot.slane %v367, 4
      %v370 = vor.u32 %v369, %v365
      %v371 = vrot.slane %v370, 4
      %v373 = vshll.u32 %v185, 16
      %v375 = vrot.slane %v373, 5
      %v376 = vsel %vm352, %v371, %v375
      %v378 = vshrl.u32 %v186, 16
      %v380 = vrot.slane %v378, 4
      %v381 = vshll.u32 %v186, 16
      %v383 = vrot.slane %v381, 5
      %v384 = vor.u32 %v380, %v383
      %v385 = vrot.slane %v384, 4
      %v387 = vshll.u32 %v187, 16
      %v389 = vrot.slane %v387, 5
      %v390 = vsel %vm352, %v385, %v389
      %v391 = vshrl.u32 %v187, 16
      %v393 = vrot.slane %v391, 4
      %v394 = vor.u32 %v393, %v389
      %v395 = vrot.slane %v394, 4
      %v397 = vshll.u32 %v188, 16
      %v399 = vrot.slane %v397, 5
      %v400 = vsel %vm352, %v395, %v399
      %v402 = vshrl.u32 %v189, 16
      %v404 = vrot.slane %v402, 4
      %v405 = vshll.u32 %v189, 16
      %v407 = vrot.slane %v405, 5
      %v408 = vor.u32 %v404, %v407
      %v409 = vrot.slane %v408, 4
      %v411 = vshll.u32 %v190, 16
      %v413 = vrot.slane %v411, 5
      %v414 = vsel %vm352, %v409, %v413
      %v415 = vshrl.u32 %v190, 16
      %v417 = vrot.slane %v415, 4
      %v418 = vor.u32 %v417, %v413
      %v419 = vrot.slane %v418, 4
      %v421 = vshll.u32 %v191, 16
      %v423 = vrot.slane %v421, 5
      %v424 = vsel %vm352, %v419, %v423
      %v426 = vshrl.u32 %v192, 16
      %v428 = vrot.slane %v426, 4
      %v429 = vshll.u32 %v192, 16
      %v431 = vrot.slane %v429, 5
      %v432 = vor.u32 %v428, %v431
      %v433 = vrot.slane %v432, 4
      %v435 = vshll.u32 %v193, 16
      %v437 = vrot.slane %v435, 5
      %v438 = vsel %vm352, %v433, %v437
      %v439 = vshrl.u32 %v193, 16
      %v441 = vrot.slane %v439, 4
      %v442 = vor.u32 %v441, %v437
      %v443 = vrot.slane %v442, 4
      %v445 = vshll.u32 %v194, 16
      %v447 = vrot.slane %v445, 5
      %v448 = vsel %vm352, %v443, %v447
      %v450 = vshrl.u32 %v195, 16
      %v452 = vrot.slane %v450, 4
      %v453 = vshll.u32 %v195, 16
      %v455 = vrot.slane %v453, 5
      %v456 = vor.u32 %v452, %v455
      %v457 = vrot.slane %v456, 4
      %v459 = vshll.u32 %v196, 16
      %v461 = vrot.slane %v459, 5
      %v462 = vsel %vm352, %v457, %v461
      %v463 = vshrl.u32 %v196, 16
      %v465 = vrot.slane %v463, 4
      %v466 = vor.u32 %v465, %v461
      %v467 = vrot.slane %v466, 4
      %v469 = vshll.u32 %v197, 16
      %v471 = vrot.slane %v469, 5
      %v472 = vsel %vm352, %v467, %v471
      %v474 = vshrl.u32 %v198, 16
      %v476 = vrot.slane %v474, 4
      %v477 = vshll.u32 %v198, 16
      %v479 = vrot.slane %v477, 5
      %v480 = vor.u32 %v476, %v479
      %v481 = vrot.slane %v480, 4
      %v483 = vshll.u32 %v199, 16
      %v485 = vrot.slane %v483, 5
      %v486 = vsel %vm352, %v481, %v485
      %v487 = vshrl.u32 %v199, 16
      %v489 = vrot.slane %v487, 4
      %v490 = vor.u32 %v489, %v485
      %v491 = vrot.slane %v490, 4
      %v493 = vshll.u32 %v200, 16
      %v495 = vrot.slane %v493, 5
      %v496 = vsel %vm352, %v491, %v495
      %v498 = vshrl.u32 %v201, 16
      %v500 = vrot.slane %v498, 4
      %v501 = vshll.u32 %v201, 16
      %v503 = vrot.slane %v501, 5
      %v504 = vor.u32 %v500, %v503
      %v505 = vrot.slane %v504, 4
      %v507 = vshll.u32 %v202, 16
      %v509 = vrot.slane %v507, 5
      %v510 = vsel %vm352, %v505, %v509
      %v511 = vshrl.u32 %v202, 16
      %v513 = vrot.slane %v511, 4
      %v514 = vor.u32 %v513, %v509
      %v515 = vrot.slane %v514, 4
      %v517 = vshll.u32 %v203, 16
      %v519 = vrot.slane %v517, 5
      %v520 = vsel %vm352, %v515, %v519
      %v522 = vshrl.u32 %v204, 16
      %v524 = vrot.slane %v522, 4
      %v525 = vshll.u32 %v204, 16
      %v527 = vrot.slane %v525, 5
      %v528 = vor.u32 %v524, %v527
      %v529 = vrot.slane %v528, 4
      %v531 = vshll.u32 %v205, 16
      %v533 = vrot.slane %v531, 5
      %v534 = vsel %vm352, %v529, %v533
      %v535 = vshrl.u32 %v205, 16
      %v537 = vrot.slane %v535, 4
      %v538 = vor.u32 %v537, %v533
      %v539 = vrot.slane %v538, 4
      %v541 = vshll.u32 %v206, 16
      %v543 = vrot.slane %v541, 5
      %v544 = vsel %vm352, %v539, %v543
      %v546 = vshrl.u32 %v207, 16
      %v548 = vrot.slane %v546, 4
      %v549 = vshll.u32 %v207, 16
      %v551 = vrot.slane %v549, 5
      %v552 = vor.u32 %v548, %v551
      %v553 = vrot.slane %v552, 4
      %v555 = vshll.u32 %v208, 16
      %v557 = vrot.slane %v555, 5
      %v558 = vsel %vm352, %v553, %v557
      %v559 = vshrl.u32 %v208, 16
      %v561 = vrot.slane %v559, 4
      %v562 = vor.u32 %v561, %v557
      %v563 = vrot.slane %v562, 4
      %v565 = vshll.u32 %v209, 16
      %v567 = vrot.slane %v565, 5
      %v568 = vsel %vm352, %v563, %v567
      %v570 = vshrl.u32 %v210, 16
      %v572 = vrot.slane %v570, 4
      %v573 = vshll.u32 %v210, 16
      %v575 = vrot.slane %v573, 5
      %v576 = vor.u32 %v572, %v575
      %v577 = vrot.slane %v576, 4
      %v579 = vshll.u32 %v211, 16
      %v581 = vrot.slane %v579, 5
      %v582 = vsel %vm352, %v577, %v581
      %v583 = vshrl.u32 %v211, 16
      %v585 = vrot.slane %v583, 4
      %v586 = vor.u32 %v585, %v581
      %v587 = vrot.slane %v586, 4
      %v589 = vshll.u32 %v212, 16
      %v591 = vrot.slane %v589, 5
      %v592 = vsel %vm352, %v587, %v591
      %v594 = vshrl.u32 %v213, 16
      %v596 = vrot.slane %v594, 4
      %v597 = vshll.u32 %v213, 16
      %v599 = vrot.slane %v597, 5
      %v600 = vor.u32 %v596, %v599
      %v601 = vrot.slane %v600, 4
      %v603 = vshll.u32 %v214, 16
      %v605 = vrot.slane %v603, 5
      %v606 = vsel %vm352, %v601, %v605
      %v607 = vshrl.u32 %v214, 16
      %v609 = vrot.slane %v607, 4
      %v610 = vor.u32 %v609, %v605
      %v611 = vrot.slane %v610, 4
      %v613 = vshll.u32 %v215, 16
      %v615 = vrot.slane %v613, 5
      %v616 = vsel %vm352, %v611, %v615
      %v618 = vshrl.u32 %v216, 16
      %v620 = vrot.slane %v618, 4
      %v621 = vshll.u32 %v216, 16
      %v623 = vrot.slane %v621, 5
      %v624 = vor.u32 %v620, %v623
      %v625 = vrot.slane %v624, 4
      %v627 = vshll.u32 %v217, 16
      %v629 = vrot.slane %v627, 5
      %v630 = vsel %vm352, %v625, %v629
      %v631 = vshrl.u32 %v217, 16
      %v633 = vrot.slane %v631, 4
      %v634 = vor.u32 %v633, %v629
      %v635 = vrot.slane %v634, 4
      %v637 = vshll.u32 %v218, 16
      %v639 = vrot.slane %v637, 5
      %v640 = vsel %vm352, %v635, %v639
      %v642 = vshrl.u32 %v219, 16
      %v644 = vrot.slane %v642, 4
      %v645 = vshll.u32 %v219, 16
      %v647 = vrot.slane %v645, 5
      %v648 = vor.u32 %v644, %v647
      %v649 = vrot.slane %v648, 4
      %v651 = vshll.u32 %v220, 16
      %v653 = vrot.slane %v651, 5
      %v654 = vsel %vm352, %v649, %v653
      %v655 = vshrl.u32 %v220, 16
      %v657 = vrot.slane %v655, 4
      %v658 = vor.u32 %v657, %v653
      %v659 = vrot.slane %v658, 4
      %v661 = vshll.u32 %v221, 16
      %v663 = vrot.slane %v661, 5
      %v664 = vsel %vm352, %v659, %v663
      %v666 = vshrl.u32 %v222, 16
      %v668 = vrot.slane %v666, 4
      %v669 = vshll.u32 %v222, 16
      %v671 = vrot.slane %v669, 5
      %v672 = vor.u32 %v668, %v671
      %v673 = vrot.slane %v672, 4
      %v675 = vshll.u32 %v223, 16
      %v677 = vrot.slane %v675, 5
      %v678 = vsel %vm352, %v673, %v677
      %v679 = vshrl.u32 %v223, 16
      %v681 = vrot.slane %v679, 4
      %v682 = vor.u32 %v681, %v677
      %v683 = vrot.slane %v682, 4
      %v685 = vshll.u32 %v224, 16
      %v687 = vrot.slane %v685, 5
      %v688 = vsel %vm352, %v683, %v687
      %v690 = vshrl.u32 %v225, 16
      %v692 = vrot.slane %v690, 4
      %v693 = vshll.u32 %v225, 16
      %v695 = vrot.slane %v693, 5
      %v696 = vor.u32 %v692, %v695
      %v697 = vrot.slane %v696, 4
      %v699 = vshll.u32 %v226, 16
      %v701 = vrot.slane %v699, 5
      %v702 = vsel %vm352, %v697, %v701
      %v703 = vshrl.u32 %v226, 16
      %v705 = vrot.slane %v703, 4
      %v706 = vor.u32 %v705, %v701
      %v707 = vrot.slane %v706, 4
      %v709 = vshll.u32 %v227, 16
      %v711 = vrot.slane %v709, 5
      %v712 = vsel %vm352, %v707, %v711
      %v714 = vshrl.u32 %v228, 16
      %v716 = vrot.slane %v714, 4
      %v717 = vshll.u32 %v228, 16
      %v719 = vrot.slane %v717, 5
      %v720 = vor.u32 %v716, %v719
      %v721 = vrot.slane %v720, 4
      %v723 = vshll.u32 %v229, 16
      %v725 = vrot.slane %v723, 5
      %v726 = vsel %vm352, %v721, %v725
      %v727 = vshrl.u32 %v229, 16
      %v729 = vrot.slane %v727, 4
      %v730 = vor.u32 %v729, %v725
      %v731 = vrot.slane %v730, 4
      %v733 = vshll.u32 %v230, 16
      %v735 = vrot.slane %v733, 5
      %v736 = vsel %vm352, %v731, %v735
      %v737 = vunpack.c.l.b16 %v366
      %v738 = vunpack.c.l.b16 %v376
      %v739 = vunpack.c.l.b16 %v390
      %v740 = vunpack.c.l.b16 %v400
      %v741 = vunpack.c.l.b16 %v414
      %v742 = vunpack.c.l.b16 %v424
      %v743 = vunpack.c.l.b16 %v438
      %v744 = vunpack.c.l.b16 %v448
      %v745 = vunpack.c.l.b16 %v462
      %v746 = vunpack.c.l.b16 %v472
      %v747 = vunpack.c.l.b16 %v486
      %v748 = vunpack.c.l.b16 %v496
      %v749 = vunpack.c.l.b16 %v510
      %v750 = vunpack.c.l.b16 %v520
      %v751 = vunpack.c.l.b16 %v534
      %v752 = vunpack.c.l.b16 %v544
      %v753 = vunpack.c.l.b16 %v558
      %v754 = vunpack.c.l.b16 %v568
      %v755 = vunpack.c.l.b16 %v582
      %v756 = vunpack.c.l.b16 %v592
      %v757 = vunpack.c.l.b16 %v606
      %v758 = vunpack.c.l.b16 %v616
      %v759 = vunpack.c.l.b16 %v630
      %v760 = vunpack.c.l.b16 %v640
      %v761 = vunpack.c.l.b16 %v654
      %v762 = vunpack.c.l.b16 %v664
      %v763 = vunpack.c.l.b16 %v678
      %v764 = vunpack.c.l.b16 %v688
      %v765 = vunpack.c.l.b16 %v702
      %v766 = vunpack.c.l.b16 %v712
      %v767 = vunpack.c.l.b16 %v726
      %v768 = vunpack.c.l.b16 %v736
      %v769 = vpack.c.b16 %v738, %v737
      %v770 = vpack.c.b16 %v740, %v739
      %v771 = vpack.c.b16 %v742, %v741
      %v772 = vpack.c.b16 %v744, %v743
      %v773 = vpack.c.b16 %v746, %v745
      %v774 = vpack.c.b16 %v748, %v747
      %v775 = vpack.c.b16 %v750, %v749
      %v776 = vpack.c.b16 %v752, %v751
      %v777 = vpack.c.b16 %v754, %v753
      %v778 = vpack.c.b16 %v756, %v755
      %v779 = vpack.c.b16 %v758, %v757
      %v780 = vpack.c.b16 %v760, %v759
      %v781 = vpack.c.b16 %v762, %v761
      %v782 = vpack.c.b16 %v764, %v763
      %v783 = vpack.c.b16 %v766, %v765
      %v784 = vpack.c.b16 %v768, %v767
      %785 = vrot.lane.b32.xlu0 %v769, 8
      %v786 = vpop.permute.xlu0 %785
      %787 = vrot.lane.b32.xlu0 %v770, 8
      %v788 = vpop.permute.xlu0 %787
      %789 = vrot.lane.b32.xlu0 %v771, 8
      %v790 = vpop.permute.xlu0 %789
      %791 = vrot.lane.b32.xlu0 %v772, 8
      %v792 = vpop.permute.xlu0 %791
      %793 = vrot.lane.b32.xlu0 %v773, 8
      %v794 = vpop.permute.xlu0 %793
      %795 = vrot.lane.b32.xlu0 %v774, 8
      %v796 = vpop.permute.xlu0 %795
      %797 = vrot.lane.b32.xlu0 %v775, 8
      %v798 = vpop.permute.xlu0 %797
      %799 = vrot.lane.b32.xlu0 %v776, 8
      %v800 = vpop.permute.xlu0 %799
      %801 = vrot.lane.b32.xlu0 %v777, 8
      %v802 = vpop.permute.xlu0 %801
      %803 = vrot.lane.b32.xlu0 %v778, 8
      %v804 = vpop.permute.xlu0 %803
      %805 = vrot.lane.b32.xlu0 %v779, 8
      %v806 = vpop.permute.xlu0 %805
      %807 = vrot.lane.b32.xlu0 %v780, 8
      %v808 = vpop.permute.xlu0 %807
      %809 = vrot.lane.b32.xlu0 %v781, 8
      %v810 = vpop.permute.xlu0 %809
      %811 = vrot.lane.b32.xlu0 %v782, 8
      %v812 = vpop.permute.xlu0 %811
      %813 = vrot.lane.b32.xlu0 %v783, 8
      %v814 = vpop.permute.xlu0 %813
      %815 = vrot.lane.b32.xlu0 %v784, 8
      %v816 = vpop.permute.xlu0 %815
      %vm833 = vcmask 130112
      %834 = vst.msk [vmem:[#allocation2] sm:$0xff] %vm833, %v786
      %835 = vst.msk [vmem:[#allocation2 + $0x8] sm:$0xff] %vm833, %v788
      %836 = vst.msk [vmem:[#allocation2 + $0x10] sm:$0xff] %vm833, %v790
      %837 = vst.msk [vmem:[#allocation2 + $0x18] sm:$0xff] %vm833, %v792
      %838 = vst.msk [vmem:[#allocation2 + $0x20] sm:$0xff] %vm833, %v794
      %839 = vst.msk [vmem:[#allocation2 + $0x28] sm:$0xff] %vm833, %v796
      %840 = vst.msk [vmem:[#allocation2 + $0x30] sm:$0xff] %vm833, %v798
      %841 = vst.msk [vmem:[#allocation2 + $0x38] sm:$0xff] %vm833, %v800
      %842 = vst.msk [vmem:[#allocation2 + $0x40] sm:$0xff] %vm833, %v802
      %843 = vst.msk [vmem:[#allocation2 + $0x48] sm:$0xff] %vm833, %v804
      %844 = vst.msk [vmem:[#allocation2 + $0x50] sm:$0xff] %vm833, %v806
      %845 = vst.msk [vmem:[#allocation2 + $0x58] sm:$0xff] %vm833, %v808
      %846 = vst.msk [vmem:[#allocation2 + $0x60] sm:$0xff] %vm833, %v810
      %847 = vst.msk [vmem:[#allocation2 + $0x68] sm:$0xff] %vm833, %v812
      %848 = vst.msk [vmem:[#allocation2 + $0x70] sm:$0xff] %vm833, %v814
      %849 = vst.msk [vmem:[#allocation2 + $0x78] sm:$0xff] %vm833, %v816
      %vm866 = vcmask 1042432
      %vm867 = vcmask 1046532
      %vm868 = vmor %vm866, %vm867
      %v869 = vrot.slane %v183, 5
      %v870 = vrot.slane %v869, 4
      %v871 = vrot.slane %v184, 5
      %v872 = vsel %vm868, %v870, %v871
      %v873 = vrot.slane %v871, 4
      %v874 = vrot.slane %v185, 5
      %v875 = vsel %vm868, %v873, %v874
      %v876 = vrot.slane %v186, 5
      %v877 = vrot.slane %v876, 4
      %v878 = vrot.slane %v187, 5
      %v879 = vsel %vm868, %v877, %v878
      %v880 = vrot.slane %v878, 4
      %v881 = vrot.slane %v188, 5
      %v882 = vsel %vm868, %v880, %v881
      %v883 = vrot.slane %v189, 5
      %v884 = vrot.slane %v883, 4
      %v885 = vrot.slane %v190, 5
      %v886 = vsel %vm868, %v884, %v885
      %v887 = vrot.slane %v885, 4
      %v888 = vrot.slane %v191, 5
      %v889 = vsel %vm868, %v887, %v888
      %v890 = vrot.slane %v192, 5
      %v891 = vrot.slane %v890, 4
      %v892 = vrot.slane %v193, 5
      %v893 = vsel %vm868, %v891, %v892
      %v894 = vrot.slane %v892, 4
      %v895 = vrot.slane %v194, 5
      %v896 = vsel %vm868, %v894, %v895
      %v897 = vrot.slane %v195, 5
      %v898 = vrot.slane %v897, 4
      %v899 = vrot.slane %v196, 5
      %v900 = vsel %vm868, %v898, %v899
      %v901 = vrot.slane %v899, 4
      %v902 = vrot.slane %v197, 5
      %v903 = vsel %vm868, %v901, %v902
      %v904 = vrot.slane %v198, 5
      %v905 = vrot.slane %v904, 4
      %v906 = vrot.slane %v199, 5
      %v907 = vsel %vm868, %v905, %v906
      %v908 = vrot.slane %v906, 4
      %v909 = vrot.slane %v200, 5
      %v910 = vsel %vm868, %v908, %v909
      %v911 = vrot.slane %v201, 5
      %v912 = vrot.slane %v911, 4
      %v913 = vrot.slane %v202, 5
      %v914 = vsel %vm868, %v912, %v913
      %v915 = vrot.slane %v913, 4
      %v916 = vrot.slane %v203, 5
      %v917 = vsel %vm868, %v915, %v916
      %v918 = vrot.slane %v204, 5
      %v919 = vrot.slane %v918, 4
      %v920 = vrot.slane %v205, 5
      %v921 = vsel %vm868, %v919, %v920
      %v922 = vrot.slane %v920, 4
      %v923 = vrot.slane %v206, 5
      %v924 = vsel %vm868, %v922, %v923
      %v925 = vrot.slane %v207, 5
      %v926 = vrot.slane %v925, 4
      %v927 = vrot.slane %v208, 5
      %v928 = vsel %vm868, %v926, %v927
      %v929 = vrot.slane %v927, 4
      %v930 = vrot.slane %v209, 5
      %v931 = vsel %vm868, %v929, %v930
      %v932 = vrot.slane %v210, 5
      %v933 = vrot.slane %v932, 4
      %v934 = vrot.slane %v211, 5
      %v935 = vsel %vm868, %v933, %v934
      %v936 = vrot.slane %v934, 4
      %v937 = vrot.slane %v212, 5
      %v938 = vsel %vm868, %v936, %v937
      %v939 = vrot.slane %v213, 5
      %v940 = vrot.slane %v939, 4
      %v941 = vrot.slane %v214, 5
      %v942 = vsel %vm868, %v940, %v941
      %v943 = vrot.slane %v941, 4
      %v944 = vrot.slane %v215, 5
      %v945 = vsel %vm868, %v943, %v944
      %v946 = vrot.slane %v216, 5
      %v947 = vrot.slane %v946, 4
      %v948 = vrot.slane %v217, 5
      %v949 = vsel %vm868, %v947, %v948
      %v950 = vrot.slane %v948, 4
      %v951 = vrot.slane %v218, 5
      %v952 = vsel %vm868, %v950, %v951
      %v953 = vrot.slane %v219, 5
      %v954 = vrot.slane %v953, 4
      %v955 = vrot.slane %v220, 5
      %v956 = vsel %vm868, %v954, %v955
      %v957 = vrot.slane %v955, 4
      %v958 = vrot.slane %v221, 5
      %v959 = vsel %vm868, %v957, %v958
      %v960 = vrot.slane %v222, 5
      %v961 = vrot.slane %v960, 4
      %v962 = vrot.slane %v223, 5
      %v963 = vsel %vm868, %v961, %v962
      %v964 = vrot.slane %v962, 4
      %v965 = vrot.slane %v224, 5
      %v966 = vsel %vm868, %v964, %v965
      %v967 = vrot.slane %v225, 5
      %v968 = vrot.slane %v967, 4
      %v969 = vrot.slane %v226, 5
      %v970 = vsel %vm868, %v968, %v969
      %v971 = vrot.slane %v969, 4
      %v972 = vrot.slane %v227, 5
      %v973 = vsel %vm868, %v971, %v972
      %v974 = vrot.slane %v228, 5
      %v975 = vrot.slane %v974, 4
      %v976 = vrot.slane %v229, 5
      %v977 = vsel %vm868, %v975, %v976
      %v978 = vrot.slane %v976, 4
      %v979 = vrot.slane %v230, 5
      %v980 = vsel %vm868, %v978, %v979
      %v981 = vunpack.c.l.b16 %v872
      %v982 = vunpack.c.l.b16 %v875
      %v983 = vunpack.c.l.b16 %v879
      %v984 = vunpack.c.l.b16 %v882
      %v985 = vunpack.c.l.b16 %v886
      %v986 = vunpack.c.l.b16 %v889
      %v987 = vunpack.c.l.b16 %v893
      %v988 = vunpack.c.l.b16 %v896
      %v989 = vunpack.c.l.b16 %v900
      %v990 = vunpack.c.l.b16 %v903
      %v991 = vunpack.c.l.b16 %v907
      %v992 = vunpack.c.l.b16 %v910
      %v993 = vunpack.c.l.b16 %v914
      %v994 = vunpack.c.l.b16 %v917
      %v995 = vunpack.c.l.b16 %v921
      %v996 = vunpack.c.l.b16 %v924
      %v997 = vunpack.c.l.b16 %v928
      %v998 = vunpack.c.l.b16 %v931
      %v999 = vunpack.c.l.b16 %v935
      %v1000 = vunpack.c.l.b16 %v938
      %v1001 = vunpack.c.l.b16 %v942
      %v1002 = vunpack.c.l.b16 %v945
      %v1003 = vunpack.c.l.b16 %v949
      %v1004 = vunpack.c.l.b16 %v952
      %v1005 = vunpack.c.l.b16 %v956
      %v1006 = vunpack.c.l.b16 %v959
      %v1007 = vunpack.c.l.b16 %v963
      %v1008 = vunpack.c.l.b16 %v966
      %v1009 = vunpack.c.l.b16 %v970
      %v1010 = vunpack.c.l.b16 %v973
      %v1011 = vunpack.c.l.b16 %v977
      %v1012 = vunpack.c.l.b16 %v980
      %v1013 = vpack.c.b16 %v982, %v981
      %v1014 = vpack.c.b16 %v984, %v983
      %v1015 = vpack.c.b16 %v986, %v985
      %v1016 = vpack.c.b16 %v988, %v987
      %v1017 = vpack.c.b16 %v990, %v989
      %v1018 = vpack.c.b16 %v992, %v991
      %v1019 = vpack.c.b16 %v994, %v993
      %v1020 = vpack.c.b16 %v996, %v995
      %v1021 = vpack.c.b16 %v998, %v997
      %v1022 = vpack.c.b16 %v1000, %v999
      %v1023 = vpack.c.b16 %v1002, %v1001
      %v1024 = vpack.c.b16 %v1004, %v1003
      %v1025 = vpack.c.b16 %v1006, %v1005
      %v1026 = vpack.c.b16 %v1008, %v1007
      %v1027 = vpack.c.b16 %v1010, %v1009
      %v1028 = vpack.c.b16 %v1012, %v1011
      %1029 = vrot.lane.b32.xlu0 %v1013, 16
      %v1030 = vpop.permute.xlu0 %1029
      %1031 = vrot.lane.b32.xlu0 %v1014, 16
      %v1032 = vpop.permute.xlu0 %1031
      %1033 = vrot.lane.b32.xlu0 %v1015, 16
      %v1034 = vpop.permute.xlu0 %1033
      %1035 = vrot.lane.b32.xlu0 %v1016, 16
      %v1036 = vpop.permute.xlu0 %1035
      %1037 = vrot.lane.b32.xlu0 %v1017, 16
      %v1038 = vpop.permute.xlu0 %1037
      %1039 = vrot.lane.b32.xlu0 %v1018, 16
      %v1040 = vpop.permute.xlu0 %1039
      %1041 = vrot.lane.b32.xlu0 %v1019, 16
      %v1042 = vpop.permute.xlu0 %1041
      %1043 = vrot.lane.b32.xlu0 %v1020, 16
      %v1044 = vpop.permute.xlu0 %1043
      %1045 = vrot.lane.b32.xlu0 %v1021, 16
      %v1046 = vpop.permute.xlu0 %1045
      %1047 = vrot.lane.b32.xlu0 %v1022, 16
      %v1048 = vpop.permute.xlu0 %1047
      %1049 = vrot.lane.b32.xlu0 %v1023, 16
      %v1050 = vpop.permute.xlu0 %1049
      %1051 = vrot.lane.b32.xlu0 %v1024, 16
      %v1052 = vpop.permute.xlu0 %1051
      %1053 = vrot.lane.b32.xlu0 %v1025, 16
      %v1054 = vpop.permute.xlu0 %1053
      %1055 = vrot.lane.b32.xlu0 %v1026, 16
      %v1056 = vpop.permute.xlu0 %1055
      %1057 = vrot.lane.b32.xlu0 %v1027, 16
      %v1058 = vpop.permute.xlu0 %1057
      %1059 = vrot.lane.b32.xlu0 %v1028, 16
      %v1060 = vpop.permute.xlu0 %1059
      %vm1077 = vcmask 195712
      %1078 = vst.msk [vmem:[#allocation2] sm:$0xff] %vm1077, %v1030
      %1079 = vst.msk [vmem:[#allocation2 + $0x8] sm:$0xff] %vm1077, %v1032
      %1080 = vst.msk [vmem:[#allocation2 + $0x10] sm:$0xff] %vm1077, %v1034
      %1081 = vst.msk [vmem:[#allocation2 + $0x18] sm:$0xff] %vm1077, %v1036
      %1082 = vst.msk [vmem:[#allocation2 + $0x20] sm:$0xff] %vm1077, %v1038
      %1083 = vst.msk [vmem:[#allocation2 + $0x28] sm:$0xff] %vm1077, %v1040
      %1084 = vst.msk [vmem:[#allocation2 + $0x30] sm:$0xff] %vm1077, %v1042
      %1085 = vst.msk [vmem:[#allocation2 + $0x38] sm:$0xff] %vm1077, %v1044
      %1086 = vst.msk [vmem:[#allocation2 + $0x40] sm:$0xff] %vm1077, %v1046
      %1087 = vst.msk [vmem:[#allocation2 + $0x48] sm:$0xff] %vm1077, %v1048
      %1088 = vst.msk [vmem:[#allocation2 + $0x50] sm:$0xff] %vm1077, %v1050
      %1089 = vst.msk [vmem:[#allocation2 + $0x58] sm:$0xff] %vm1077, %v1052
      %1090 = vst.msk [vmem:[#allocation2 + $0x60] sm:$0xff] %vm1077, %v1054
      %1091 = vst.msk [vmem:[#allocation2 + $0x68] sm:$0xff] %vm1077, %v1056
      %1092 = vst.msk [vmem:[#allocation2 + $0x70] sm:$0xff] %vm1077, %v1058
      %1093 = vst.msk [vmem:[#allocation2 + $0x78] sm:$0xff] %vm1077, %v1060
      %v1096 = vunpack.c.l.b16 %v231
      %v1097 = vunpack.c.l.b16 %v232
      %v1098 = vpack.c.b16 %v1097, %v1096
      %1099 = vrot.lane.b32.xlu0 %v302, 24
      %v1100 = vpop.permute.xlu0 %1099
      %1101 = vrot.lane.b32.xlu0 %v303, 24
      %v1102 = vpop.permute.xlu0 %1101
      %1103 = vrot.lane.b32.xlu0 %v304, 24
      %v1104 = vpop.permute.xlu0 %1103
      %1105 = vrot.lane.b32.xlu0 %v305, 24
      %v1106 = vpop.permute.xlu0 %1105
      %1107 = vrot.lane.b32.xlu0 %v306, 24
      %v1108 = vpop.permute.xlu0 %1107
      %1109 = vrot.lane.b32.xlu0 %v307, 24
      %v1110 = vpop.permute.xlu0 %1109
      %1111 = vrot.lane.b32.xlu0 %v308, 24
      %v1112 = vpop.permute.xlu0 %1111
      %1113 = vrot.lane.b32.xlu0 %v309, 24
      %v1114 = vpop.permute.xlu0 %1113
      %1115 = vrot.lane.b32.xlu0 %v310, 24
      %v1116 = vpop.permute.xlu0 %1115
      %1117 = vrot.lane.b32.xlu0 %v311, 24
      %v1118 = vpop.permute.xlu0 %1117
      %1119 = vrot.lane.b32.xlu0 %v312, 24
      %v1120 = vpop.permute.xlu0 %1119
      %1121 = vrot.lane.b32.xlu0 %v313, 24
      %v1122 = vpop.permute.xlu0 %1121
      %1123 = vrot.lane.b32.xlu0 %v314, 24
      %v1124 = vpop.permute.xlu0 %1123
      %1125 = vrot.lane.b32.xlu0 %v315, 24
      %v1126 = vpop.permute.xlu0 %1125
      %1127 = vrot.lane.b32.xlu0 %v316, 24
      %v1128 = vpop.permute.xlu0 %1127
      %1129 = vrot.lane.b32.xlu0 %v1098, 24
      %v1130 = vpop.permute.xlu0 %1129
      %vm1147 = vcmask 261312
      %1148 = vst.msk [vmem:[#allocation2] sm:$0xff] %vm1147, %v1100
      %1149 = vst.msk [vmem:[#allocation2 + $0x8] sm:$0xff] %vm1147, %v1102
      %1150 = vst.msk [vmem:[#allocation2 + $0x10] sm:$0xff] %vm1147, %v1104
      %1151 = vst.msk [vmem:[#allocation2 + $0x18] sm:$0xff] %vm1147, %v1106
      %1152 = vst.msk [vmem:[#allocation2 + $0x20] sm:$0xff] %vm1147, %v1108
      %1153 = vst.msk [vmem:[#allocation2 + $0x28] sm:$0xff] %vm1147, %v1110
      %1154 = vst.msk [vmem:[#allocation2 + $0x30] sm:$0xff] %vm1147, %v1112
      %1155 = vst.msk [vmem:[#allocation2 + $0x38] sm:$0xff] %vm1147, %v1114
      %1156 = vst.msk [vmem:[#allocation2 + $0x40] sm:$0xff] %vm1147, %v1116
      %1157 = vst.msk [vmem:[#allocation2 + $0x48] sm:$0xff] %vm1147, %v1118
      %1158 = vst.msk [vmem:[#allocation2 + $0x50] sm:$0xff] %vm1147, %v1120
      %1159 = vst.msk [vmem:[#allocation2 + $0x58] sm:$0xff] %vm1147, %v1122
      %1160 = vst.msk [vmem:[#allocation2 + $0x60] sm:$0xff] %vm1147, %v1124
      %1161 = vst.msk [vmem:[#allocation2 + $0x68] sm:$0xff] %vm1147, %v1126
      %1162 = vst.msk [vmem:[#allocation2 + $0x70] sm:$0xff] %vm1147, %v1128
      %1163 = vst.msk [vmem:[#allocation2 + $0x78] sm:$0xff] %vm1147, %v1130
      %v1165 = vshrl.u32 %v231, 16
      %v1167 = vrot.slane %v1165, 4
      %v1168 = vshll.u32 %v231, 16
      %v1170 = vrot.slane %v1168, 5
      %v1171 = vor.u32 %v1167, %v1170
      %v1172 = vrot.slane %v1171, 4
      %v1174 = vshll.u32 %v232, 16
      %v1176 = vrot.slane %v1174, 5
      %v1177 = vsel %vm352, %v1172, %v1176
      %v1178 = vshrl.u32 %v232, 16
      %v1180 = vrot.slane %v1178, 4
      %v1181 = vor.u32 %v1180, %v1176
      %v1182 = vrot.slane %v1181, 4
      %v1184 = vshll.u32 %v233, 16
      %v1186 = vrot.slane %v1184, 5
      %v1187 = vsel %vm352, %v1182, %v1186
      %v1188 = vunpack.c.l.b16 %v1177
      %v1189 = vunpack.c.l.b16 %v1187
      %v1190 = vpack.c.b16 %v1189, %v1188
      %1191 = vrot.lane.b32.xlu0 %v770, 32
      %v1192 = vpop.permute.xlu0 %1191
      %1193 = vrot.lane.b32.xlu0 %v771, 32
      %v1194 = vpop.permute.xlu0 %1193
      %1195 = vrot.lane.b32.xlu0 %v772, 32
      %v1196 = vpop.permute.xlu0 %1195
      %1197 = vrot.lane.b32.xlu0 %v773, 32
      %v1198 = vpop.permute.xlu0 %1197
      %1199 = vrot.lane.b32.xlu0 %v774, 32
      %v1200 = vpop.permute.xlu0 %1199
      %1201 = vrot.lane.b32.xlu0 %v775, 32
      %v1202 = vpop.permute.xlu0 %1201
      %1203 = vrot.lane.b32.xlu0 %v776, 32
      %v1204 = vpop.permute.xlu0 %1203
      %1205 = vrot.lane.b32.xlu0 %v777, 32
      %v1206 = vpop.permute.xlu0 %1205
      %1207 = vrot.lane.b32.xlu0 %v778, 32
      %v1208 = vpop.permute.xlu0 %1207
      %1209 = vrot.lane.b32.xlu0 %v779, 32
      %v1210 = vpop.permute.xlu0 %1209
      %1211 = vrot.lane.b32.xlu0 %v780, 32
      %v1212 = vpop.permute.xlu0 %1211
      %1213 = vrot.lane.b32.xlu0 %v781, 32
      %v1214 = vpop.permute.xlu0 %1213
      %1215 = vrot.lane.b32.xlu0 %v782, 32
      %v1216 = vpop.permute.xlu0 %1215
      %1217 = vrot.lane.b32.xlu0 %v783, 32
      %v1218 = vpop.permute.xlu0 %1217
      %1219 = vrot.lane.b32.xlu0 %v784, 32
      %v1220 = vpop.permute.xlu0 %1219
      %1221 = vrot.lane.b32.xlu0 %v1190, 32
      %v1222 = vpop.permute.xlu0 %1221
      %vm1239 = vcmask 326912
      %1240 = vst.msk [vmem:[#allocation2] sm:$0xff] %vm1239, %v1192
      %1241 = vst.msk [vmem:[#allocation2 + $0x8] sm:$0xff] %vm1239, %v1194
      %1242 = vst.msk [vmem:[#allocation2 + $0x10] sm:$0xff] %vm1239, %v1196
      %1243 = vst.msk [vmem:[#allocation2 + $0x18] sm:$0xff] %vm1239, %v1198
      %1244 = vst.msk [vmem:[#allocation2 + $0x20] sm:$0xff] %vm1239, %v1200
      %1245 = vst.msk [vmem:[#allocation2 + $0x28] sm:$0xff] %vm1239, %v1202
      %1246 = vst.msk [vmem:[#allocation2 + $0x30] sm:$0xff] %vm1239, %v1204
      %1247 = vst.msk [vmem:[#allocation2 + $0x38] sm:$0xff] %vm1239, %v1206
      %1248 = vst.msk [vmem:[#allocation2 + $0x40] sm:$0xff] %vm1239, %v1208
      %1249 = vst.msk [vmem:[#allocation2 + $0x48] sm:$0xff] %vm1239, %v1210
      %1250 = vst.msk [vmem:[#allocation2 + $0x50] sm:$0xff] %vm1239, %v1212
      %1251 = vst.msk [vmem:[#allocation2 + $0x58] sm:$0xff] %vm1239, %v1214
      %1252 = vst.msk [vmem:[#allocation2 + $0x60] sm:$0xff] %vm1239, %v1216
      %1253 = vst.msk [vmem:[#allocation2 + $0x68] sm:$0xff] %vm1239, %v1218
      %1254 = vst.msk [vmem:[#allocation2 + $0x70] sm:$0xff] %vm1239, %v1220
      %1255 = vst.msk [vmem:[#allocation2 + $0x78] sm:$0xff] %vm1239, %v1222
      %v1257 = vrot.slane %v231, 5
      %v1258 = vrot.slane %v1257, 4
      %v1259 = vrot.slane %v232, 5
      %v1260 = vsel %vm868, %v1258, %v1259
      %v1261 = vrot.slane %v1259, 4
      %v1262 = vrot.slane %v233, 5
      %v1263 = vsel %vm868, %v1261, %v1262
      %v1264 = vunpack.c.l.b16 %v1260
      %v1265 = vunpack.c.l.b16 %v1263
      %v1266 = vpack.c.b16 %v1265, %v1264
      %1267 = vrot.lane.b32.xlu0 %v1014, 40
      %v1268 = vpop.permute.xlu0 %1267
      %1269 = vrot.lane.b32.xlu0 %v1015, 40
      %v1270 = vpop.permute.xlu0 %1269
      %1271 = vrot.lane.b32.xlu0 %v1016, 40
      %v1272 = vpop.permute.xlu0 %1271
      %1273 = vrot.lane.b32.xlu0 %v1017, 40
      %v1274 = vpop.permute.xlu0 %1273
      %1275 = vrot.lane.b32.xlu0 %v1018, 40
      %v1276 = vpop.permute.xlu0 %1275
      %1277 = vrot.lane.b32.xlu0 %v1019, 40
      %v1278 = vpop.permute.xlu0 %1277
      %1279 = vrot.lane.b32.xlu0 %v1020, 40
      %v1280 = vpop.permute.xlu0 %1279
      %1281 = vrot.lane.b32.xlu0 %v1021, 40
      %v1282 = vpop.permute.xlu0 %1281
      %1283 = vrot.lane.b32.xlu0 %v1022, 40
      %v1284 = vpop.permute.xlu0 %1283
      %1285 = vrot.lane.b32.xlu0 %v1023, 40
      %v1286 = vpop.permute.xlu0 %1285
      %1287 = vrot.lane.b32.xlu0 %v1024, 40
      %v1288 = vpop.permute.xlu0 %1287
      %1289 = vrot.lane.b32.xlu0 %v1025, 40
      %v1290 = vpop.permute.xlu0 %1289
      %1291 = vrot.lane.b32.xlu0 %v1026, 40
      %v1292 = vpop.permute.xlu0 %1291
      %1293 = vrot.lane.b32.xlu0 %v1027, 40
      %v1294 = vpop.permute.xlu0 %1293
      %1295 = vrot.lane.b32.xlu0 %v1028, 40
      %v1296 = vpop.permute.xlu0 %1295
      %1297 = vrot.lane.b32.xlu0 %v1266, 40
      %v1298 = vpop.permute.xlu0 %1297
      %vm1315 = vcmask 392512
      %1316 = vst.msk [vmem:[#allocation2] sm:$0xff] %vm1315, %v1268
      %1317 = vst.msk [vmem:[#allocation2 + $0x8] sm:$0xff] %vm1315, %v1270
      %1318 = vst.msk [vmem:[#allocation2 + $0x10] sm:$0xff] %vm1315, %v1272
      %1319 = vst.msk [vmem:[#allocation2 + $0x18] sm:$0xff] %vm1315, %v1274
      %1320 = vst.msk [vmem:[#allocation2 + $0x20] sm:$0xff] %vm1315, %v1276
      %1321 = vst.msk [vmem:[#allocation2 + $0x28] sm:$0xff] %vm1315, %v1278
      %1322 = vst.msk [vmem:[#allocation2 + $0x30] sm:$0xff] %vm1315, %v1280
      %1323 = vst.msk [vmem:[#allocation2 + $0x38] sm:$0xff] %vm1315, %v1282
      %1324 = vst.msk [vmem:[#allocation2 + $0x40] sm:$0xff] %vm1315, %v1284
      %1325 = vst.msk [vmem:[#allocation2 + $0x48] sm:$0xff] %vm1315, %v1286
      %1326 = vst.msk [vmem:[#allocation2 + $0x50] sm:$0xff] %vm1315, %v1288
      %1327 = vst.msk [vmem:[#allocation2 + $0x58] sm:$0xff] %vm1315, %v1290
      %1328 = vst.msk [vmem:[#allocation2 + $0x60] sm:$0xff] %vm1315, %v1292
      %1329 = vst.msk [vmem:[#allocation2 + $0x68] sm:$0xff] %vm1315, %v1294
      %1330 = vst.msk [vmem:[#allocation2 + $0x70] sm:$0xff] %vm1315, %v1296
      %1331 = vst.msk [vmem:[#allocation2 + $0x78] sm:$0xff] %vm1315, %v1298
      %v1334 = vunpack.c.l.b16 %v234
      %v1335 = vunpack.c.l.b16 %v235
      %v1336 = vpack.c.b16 %v1335, %v1334
      %1337 = vrot.lane.b32.xlu0 %v303, 48
      %v1338 = vpop.permute.xlu0 %1337
      %1339 = vrot.lane.b32.xlu0 %v304, 48
      %v1340 = vpop.permute.xlu0 %1339
      %1341 = vrot.lane.b32.xlu0 %v305, 48
      %v1342 = vpop.permute.xlu0 %1341
      %1343 = vrot.lane.b32.xlu0 %v306, 48
      %v1344 = vpop.permute.xlu0 %1343
      %1345 = vrot.lane.b32.xlu0 %v307, 48
      %v1346 = vpop.permute.xlu0 %1345
      %1347 = vrot.lane.b32.xlu0 %v308, 48
      %v1348 = vpop.permute.xlu0 %1347
      %1349 = vrot.lane.b32.xlu0 %v309, 48
      %v1350 = vpop.permute.xlu0 %1349
      %1351 = vrot.lane.b32.xlu0 %v310, 48
      %v1352 = vpop.permute.xlu0 %1351
      %1353 = vrot.lane.b32.xlu0 %v311, 48
      %v1354 = vpop.permute.xlu0 %1353
      %1355 = vrot.lane.b32.xlu0 %v312, 48
      %v1356 = vpop.permute.xlu0 %1355
      %1357 = vrot.lane.b32.xlu0 %v313, 48
      %v1358 = vpop.permute.xlu0 %1357
      %1359 = vrot.lane.b32.xlu0 %v314, 48
      %v1360 = vpop.permute.xlu0 %1359
      %1361 = vrot.lane.b32.xlu0 %v315, 48
      %v1362 = vpop.permute.xlu0 %1361
      %1363 = vrot.lane.b32.xlu0 %v316, 48
      %v1364 = vpop.permute.xlu0 %1363
      %1365 = vrot.lane.b32.xlu0 %v1098, 48
      %v1366 = vpop.permute.xlu0 %1365
      %1367 = vrot.lane.b32.xlu0 %v1336, 48
      %v1368 = vpop.permute.xlu0 %1367
      %vm1385 = vcmask 458112
      %1386 = vst.msk [vmem:[#allocation2] sm:$0xff] %vm1385, %v1338
      %1387 = vst.msk [vmem:[#allocation2 + $0x8] sm:$0xff] %vm1385, %v1340
      %1388 = vst.msk [vmem:[#allocation2 + $0x10] sm:$0xff] %vm1385, %v1342
      %1389 = vst.msk [vmem:[#allocation2 + $0x18] sm:$0xff] %vm1385, %v1344
      %1390 = vst.msk [vmem:[#allocation2 + $0x20] sm:$0xff] %vm1385, %v1346
      %1391 = vst.msk [vmem:[#allocation2 + $0x28] sm:$0xff] %vm1385, %v1348
      %1392 = vst.msk [vmem:[#allocation2 + $0x30] sm:$0xff] %vm1385, %v1350
      %1393 = vst.msk [vmem:[#allocation2 + $0x38] sm:$0xff] %vm1385, %v1352
      %1394 = vst.msk [vmem:[#allocation2 + $0x40] sm:$0xff] %vm1385, %v1354
      %1395 = vst.msk [vmem:[#allocation2 + $0x48] sm:$0xff] %vm1385, %v1356
      %1396 = vst.msk [vmem:[#allocation2 + $0x50] sm:$0xff] %vm1385, %v1358
      %1397 = vst.msk [vmem:[#allocation2 + $0x58] sm:$0xff] %vm1385, %v1360
      %1398 = vst.msk [vmem:[#allocation2 + $0x60] sm:$0xff] %vm1385, %v1362
      %1399 = vst.msk [vmem:[#allocation2 + $0x68] sm:$0xff] %vm1385, %v1364
      %1400 = vst.msk [vmem:[#allocation2 + $0x70] sm:$0xff] %vm1385, %v1366
      %1401 = vst.msk [vmem:[#allocation2 + $0x78] sm:$0xff] %vm1385, %v1368
      %v1403 = vshrl.u32 %v234, 16
      %v1405 = vrot.slane %v1403, 4
      %v1406 = vshll.u32 %v234, 16
      %v1408 = vrot.slane %v1406, 5
      %v1409 = vor.u32 %v1405, %v1408
      %v1410 = vrot.slane %v1409, 4
      %v1412 = vshll.u32 %v235, 16
      %v1414 = vrot.slane %v1412, 5
      %v1415 = vsel %vm352, %v1410, %v1414
      %v1416 = vshrl.u32 %v235, 16
      %v1418 = vrot.slane %v1416, 4
      %v1419 = vor.u32 %v1418, %v1414
      %v1420 = vrot.slane %v1419, 4
      %v1422 = vshll.u32 %v236, 16
      %v1424 = vrot.slane %v1422, 5
      %v1425 = vsel %vm352, %v1420, %v1424
      %v1426 = vunpack.c.l.b16 %v1415
      %v1427 = vunpack.c.l.b16 %v1425
      %v1428 = vpack.c.b16 %v1427, %v1426
      %1429 = vrot.lane.b32.xlu0 %v771, 56
      %v1430 = vpop.permute.xlu0 %1429
      %1431 = vrot.lane.b32.xlu0 %v772, 56
      %v1432 = vpop.permute.xlu0 %1431
      %1433 = vrot.lane.b32.xlu0 %v773, 56
      %v1434 = vpop.permute.xlu0 %1433
      %1435 = vrot.lane.b32.xlu0 %v774, 56
      %v1436 = vpop.permute.xlu0 %1435
      %1437 = vrot.lane.b32.xlu0 %v775, 56
      %v1438 = vpop.permute.xlu0 %1437
      %1439 = vrot.lane.b32.xlu0 %v776, 56
      %v1440 = vpop.permute.xlu0 %1439
      %1441 = vrot.lane.b32.xlu0 %v777, 56
      %v1442 = vpop.permute.xlu0 %1441
      %1443 = vrot.lane.b32.xlu0 %v778, 56
      %v1444 = vpop.permute.xlu0 %1443
      %1445 = vrot.lane.b32.xlu0 %v779, 56
      %v1446 = vpop.permute.xlu0 %1445
      %1447 = vrot.lane.b32.xlu0 %v780, 56
      %v1448 = vpop.permute.xlu0 %1447
      %1449 = vrot.lane.b32.xlu0 %v781, 56
      %v1450 = vpop.permute.xlu0 %1449
      %1451 = vrot.lane.b32.xlu0 %v782, 56
      %v1452 = vpop.permute.xlu0 %1451
      %1453 = vrot.lane.b32.xlu0 %v783, 56
      %v1454 = vpop.permute.xlu0 %1453
      %1455 = vrot.lane.b32.xlu0 %v784, 56
      %v1456 = vpop.permute.xlu0 %1455
      %1457 = vrot.lane.b32.xlu0 %v1190, 56
      %v1458 = vpop.permute.xlu0 %1457
      %1459 = vrot.lane.b32.xlu0 %v1428, 56
      %v1460 = vpop.permute.xlu0 %1459
      %vm1477 = vcmask 523712
      %1478 = vst.msk [vmem:[#allocation2] sm:$0xff] %vm1477, %v1430
      %1479 = vst.msk [vmem:[#allocation2 + $0x8] sm:$0xff] %vm1477, %v1432
      %1480 = vst.msk [vmem:[#allocation2 + $0x10] sm:$0xff] %vm1477, %v1434
      %1481 = vst.msk [vmem:[#allocation2 + $0x18] sm:$0xff] %vm1477, %v1436
      %1482 = vst.msk [vmem:[#allocation2 + $0x20] sm:$0xff] %vm1477, %v1438
      %1483 = vst.msk [vmem:[#allocation2 + $0x28] sm:$0xff] %vm1477, %v1440
      %1484 = vst.msk [vmem:[#allocation2 + $0x30] sm:$0xff] %vm1477, %v1442
      %1485 = vst.msk [vmem:[#allocation2 + $0x38] sm:$0xff] %vm1477, %v1444
      %1486 = vst.msk [vmem:[#allocation2 + $0x40] sm:$0xff] %vm1477, %v1446
      %1487 = vst.msk [vmem:[#allocation2 + $0x48] sm:$0xff] %vm1477, %v1448
      %1488 = vst.msk [vmem:[#allocation2 + $0x50] sm:$0xff] %vm1477, %v1450
      %1489 = vst.msk [vmem:[#allocation2 + $0x58] sm:$0xff] %vm1477, %v1452
      %1490 = vst.msk [vmem:[#allocation2 + $0x60] sm:$0xff] %vm1477, %v1454
      %1491 = vst.msk [vmem:[#allocation2 + $0x68] sm:$0xff] %vm1477, %v1456
      %1492 = vst.msk [vmem:[#allocation2 + $0x70] sm:$0xff] %vm1477, %v1458
      %1493 = vst.msk [vmem:[#allocation2 + $0x78] sm:$0xff] %vm1477, %v1460
      %v1495 = vrot.slane %v234, 5
      %v1496 = vrot.slane %v1495, 4
      %v1497 = vrot.slane %v235, 5
      %v1498 = vsel %vm868, %v1496, %v1497
      %v1499 = vrot.slane %v1497, 4
      %v1500 = vrot.slane %v236, 5
      %v1501 = vsel %vm868, %v1499, %v1500
      %v1502 = vunpack.c.l.b16 %v1498
      %v1503 = vunpack.c.l.b16 %v1501
      %v1504 = vpack.c.b16 %v1503, %v1502
      %1505 = vrot.lane.b32.xlu0 %v1015, 64
      %v1506 = vpop.permute.xlu0 %1505
      %1507 = vrot.lane.b32.xlu0 %v1016, 64
      %v1508 = vpop.permute.xlu0 %1507
      %1509 = vrot.lane.b32.xlu0 %v1017, 64
      %v1510 = vpop.permute.xlu0 %1509
      %1511 = vrot.lane.b32.xlu0 %v1018, 64
      %v1512 = vpop.permute.xlu0 %1511
      %1513 = vrot.lane.b32.xlu0 %v1019, 64
      %v1514 = vpop.permute.xlu0 %1513
      %1515 = vrot.lane.b32.xlu0 %v1020, 64
      %v1516 = vpop.permute.xlu0 %1515
      %1517 = vrot.lane.b32.xlu0 %v1021, 64
      %v1518 = vpop.permute.xlu0 %1517
      %1519 = vrot.lane.b32.xlu0 %v1022, 64
      %v1520 = vpop.permute.xlu0 %1519
      %1521 = vrot.lane.b32.xlu0 %v1023, 64
      %v1522 = vpop.permute.xlu0 %1521
      %1523 = vrot.lane.b32.xlu0 %v1024, 64
      %v1524 = vpop.permute.xlu0 %1523
      %1525 = vrot.lane.b32.xlu0 %v1025, 64
      %v1526 = vpop.permute.xlu0 %1525
      %1527 = vrot.lane.b32.xlu0 %v1026, 64
      %v1528 = vpop.permute.xlu0 %1527
      %1529 = vrot.lane.b32.xlu0 %v1027, 64
      %v1530 = vpop.permute.xlu0 %1529
      %1531 = vrot.lane.b32.xlu0 %v1028, 64
      %v1532 = vpop.permute.xlu0 %1531
      %1533 = vrot.lane.b32.xlu0 %v1266, 64
      %v1534 = vpop.permute.xlu0 %1533
      %1535 = vrot.lane.b32.xlu0 %v1504, 64
      %v1536 = vpop.permute.xlu0 %1535
      %vm1553 = vcmask 589312
      %1554 = vst.msk [vmem:[#allocation2] sm:$0xff] %vm1553, %v1506
      %1555 = vst.msk [vmem:[#allocation2 + $0x8] sm:$0xff] %vm1553, %v1508
      %1556 = vst.msk [vmem:[#allocation2 + $0x10] sm:$0xff] %vm1553, %v1510
      %1557 = vst.msk [vmem:[#allocation2 + $0x18] sm:$0xff] %vm1553, %v1512
      %1558 = vst.msk [vmem:[#allocation2 + $0x20] sm:$0xff] %vm1553, %v1514
      %1559 = vst.msk [vmem:[#allocation2 + $0x28] sm:$0xff] %vm1553, %v1516
      %1560 = vst.msk [vmem:[#allocation2 + $0x30] sm:$0xff] %vm1553, %v1518
      %1561 = vst.msk [vmem:[#allocation2 + $0x38] sm:$0xff] %vm1553, %v1520
      %1562 = vst.msk [vmem:[#allocation2 + $0x40] sm:$0xff] %vm1553, %v1522
      %1563 = vst.msk [vmem:[#allocation2 + $0x48] sm:$0xff] %vm1553, %v1524
      %1564 = vst.msk [vmem:[#allocation2 + $0x50] sm:$0xff] %vm1553, %v1526
      %1565 = vst.msk [vmem:[#allocation2 + $0x58] sm:$0xff] %vm1553, %v1528
      %1566 = vst.msk [vmem:[#allocation2 + $0x60] sm:$0xff] %vm1553, %v1530
      %1567 = vst.msk [vmem:[#allocation2 + $0x68] sm:$0xff] %vm1553, %v1532
      %1568 = vst.msk [vmem:[#allocation2 + $0x70] sm:$0xff] %vm1553, %v1534
      %1569 = vst.msk [vmem:[#allocation2 + $0x78] sm:$0xff] %vm1553, %v1536
      %vm1570 = vcmask 1048128
      %1571 = vst.msk [vmem:[#allocation2] sm:$0xff] %vm1570, 0
      %1572 = vst.msk [vmem:[#allocation2 + $0x8] sm:$0xff] %vm1570, 0
      %1573 = vst.msk [vmem:[#allocation2 + $0x10] sm:$0xff] %vm1570, 0
      %1574 = vst.msk [vmem:[#allocation2 + $0x18] sm:$0xff] %vm1570, 0
      %1575 = vst.msk [vmem:[#allocation2 + $0x20] sm:$0xff] %vm1570, 0
      %1576 = vst.msk [vmem:[#allocation2 + $0x28] sm:$0xff] %vm1570, 0
      %1577 = vst.msk [vmem:[#allocation2 + $0x30] sm:$0xff] %vm1570, 0
      %1578 = vst.msk [vmem:[#allocation2 + $0x38] sm:$0xff] %vm1570, 0
      %1579 = vst.msk [vmem:[#allocation2 + $0x40] sm:$0xff] %vm1570, 0
      %1580 = vst.msk [vmem:[#allocation2 + $0x48] sm:$0xff] %vm1570, 0
      %1581 = vst.msk [vmem:[#allocation2 + $0x50] sm:$0xff] %vm1570, 0
      %1582 = vst.msk [vmem:[#allocation2 + $0x58] sm:$0xff] %vm1570, 0
      %1583 = vst.msk [vmem:[#allocation2 + $0x60] sm:$0xff] %vm1570, 0
      %1584 = vst.msk [vmem:[#allocation2 + $0x68] sm:$0xff] %vm1570, 0
      %1585 = vst.msk [vmem:[#allocation2 + $0x70] sm:$0xff] %vm1570, 0
      %1586 = vst.msk [vmem:[#allocation2 + $0x78] sm:$0xff] %vm1570, 0
      %v1587 = vld [vmem:[#allocation2] sm:$0xff]
      %v1588 = vld [vmem:[#allocation2 + $0x8] sm:$0xff]
      %v1589 = vld [vmem:[#allocation2 + $0x10] sm:$0xff]
      %v1590 = vld [vmem:[#allocation2 + $0x18] sm:$0xff]
      %v1591 = vld [vmem:[#allocation2 + $0x20] sm:$0xff]
      %v1592 = vld [vmem:[#allocation2 + $0x28] sm:$0xff]
      %v1593 = vld [vmem:[#allocation2 + $0x30] sm:$0xff]
      %v1594 = vld [vmem:[#allocation2 + $0x38] sm:$0xff]
      %v1595 = vld [vmem:[#allocation2 + $0x40] sm:$0xff]
      %v1596 = vld [vmem:[#allocation2 + $0x48] sm:$0xff]
      %v1597 = vld [vmem:[#allocation2 + $0x50] sm:$0xff]
      %v1598 = vld [vmem:[#allocation2 + $0x58] sm:$0xff]
      %v1599 = vld [vmem:[#allocation2 + $0x60] sm:$0xff]
      %v1600 = vld [vmem:[#allocation2 + $0x68] sm:$0xff]
      %v1601 = vld [vmem:[#allocation2 + $0x70] sm:$0xff]
      %v1602 = vld [vmem:[#allocation2 + $0x78] sm:$0xff]
      %v1603 = vld [vmem:[%s1] sm:$0xf]
      %v1604 = vld [vmem:[%s1 + $0x4] sm:$0xf]
      %v1605 = vld [vmem:[%s1 + $0x8] sm:$0xf]
      %v1606 = vld [vmem:[%s1 + $0xc] sm:$0xf]
      %v1607 = vld [vmem:[%s1 + $0x10] sm:$0xf]
      %v1608 = vld [vmem:[%s1 + $0x14] sm:$0xf]
      %v1609 = vld [vmem:[%s1 + $0x18] sm:$0xf]
      %v1610 = vld [vmem:[%s1 + $0x1c] sm:$0xf]
      %v1611 = vld [vmem:[%s1 + $0x20] sm:$0xf]
      %v1612 = vld [vmem:[%s1 + $0x24] sm:$0xf]
      %v1613 = vld [vmem:[%s1 + $0x28] sm:$0xf]
      %v1614 = vld [vmem:[%s1 + $0x2c] sm:$0xf]
      %v1615 = vld [vmem:[%s1 + $0x30] sm:$0xf]
      %v1616 = vld [vmem:[%s1 + $0x34] sm:$0xf]
      %v1617 = vld [vmem:[%s1 + $0x38] sm:$0xf]
      %v1618 = vld [vmem:[%s1 + $0x3c] sm:$0xf]
      %v1635 = vunpack.c.l.b16 %v1603
      %v1636 = vunpack.c.l.b16 %v1604
      %v1637 = vunpack.c.l.b16 %v1605
      %v1638 = vunpack.c.l.b16 %v1606
      %v1639 = vunpack.c.l.b16 %v1607
      %v1640 = vunpack.c.l.b16 %v1608
      %v1641 = vunpack.c.l.b16 %v1609
      %v1642 = vunpack.c.l.b16 %v1610
      %v1643 = vunpack.c.l.b16 %v1611
      %v1644 = vunpack.c.l.b16 %v1612
      %v1645 = vunpack.c.l.b16 %v1613
      %v1646 = vunpack.c.l.b16 %v1614
      %v1647 = vunpack.c.l.b16 %v1615
      %v1648 = vunpack.c.l.b16 %v1616
      %v1649 = vunpack.c.l.b16 %v1617
      %v1650 = vunpack.c.l.b16 %v1618
      %v1651 = vpack.c.b16 %v1636, %v1635
      %v1652 = vpack.c.b16 %v1638, %v1637
      %v1653 = vpack.c.b16 %v1640, %v1639
      %v1654 = vpack.c.b16 %v1642, %v1641
      %v1655 = vpack.c.b16 %v1644, %v1643
      %v1656 = vpack.c.b16 %v1646, %v1645
      %v1657 = vpack.c.b16 %v1648, %v1647
      %v1658 = vpack.c.b16 %v1650, %v1649
      %1667 = vmatprep.subr.bf16.mxu0 0
      %1668 = vmatpush1.bf16.msra.mxu0 %v1651
      %1669 = vmatprep.subr.bf16.mxu0 0
      %1670 = vmatpush1.bf16.msra.mxu0 %v1652
      %1671 = vmatprep.subr.bf16.mxu0 0
      %1672 = vmatpush1.bf16.msra.mxu0 %v1653
      %1673 = vmatprep.subr.bf16.mxu0 0
      %1674 = vmatpush1.bf16.msra.mxu0 %v1654
      %1675 = vmatprep.subr.bf16.mxu0 0
      %1676 = vmatpush1.bf16.msra.mxu0 %v1655
      %1677 = vmatprep.subr.bf16.mxu0 0
      %1678 = vmatpush1.bf16.msra.mxu0 %v1656
      %1679 = vmatprep.subr.bf16.mxu0 0
      %1680 = vmatpush1.bf16.msra.mxu0 %v1657
      %1681 = vmatprep.subr.bf16.mxu0 0
      %1682 = vmatpush1.bf16.msra.mxu0 %v1658
      %1683 = vmatprep.subr.bf16.mxu0 0
      %1684 = vmatpush1.bf16.msra.mxu0 0
      %1685 = vmatprep.subr.bf16.mxu0 0
      %1686 = vmatpush1.bf16.msra.mxu0 0
      %1687 = vmatprep.subr.bf16.mxu0 0
      %1688 = vmatpush1.bf16.msra.mxu0 0
      %1689 = vmatprep.subr.bf16.mxu0 0
      %1690 = vmatpush1.bf16.msra.mxu0 0
      %1691 = vmatprep.subr.bf16.mxu0 0
      %1692 = vmatpush1.bf16.msra.mxu0 0
      %1693 = vmatprep.subr.bf16.mxu0 0
      %1694 = vmatpush1.bf16.msra.mxu0 0
      %1695 = vmatprep.subr.bf16.mxu0 0
      %1696 = vmatpush1.bf16.msra.mxu0 0
      %1697 = vmatprep.subr.bf16.mxu0 0
      %1698 = vmatpush1.bf16.msra.mxu0 0
      %1699 = vmatprep.mubr.bf16.mxu0 0
      %1700 = vmatmul.mubr.bf16.gmra.mrb[0].mxu0 %v1587
      %v1701 = vpop.f32.mrb[0].mxu0
      %v1702 = vadd.f32 0.0, %v1701
      %v1703 = vpop.f32.mrb[0].mxu0
      %v1704 = vpop.f32.mrb[0].mxu0
      %v1705 = vadd.f32 0.0, %v1704
      %v1706 = vpop.f32.mrb[0].mxu0
      %1707 = vmatprep.mubr.bf16.mxu0 0
      %1708 = vmatmul.mubr.bf16.gmra.mrb[0].mxu0 %v1588
      %v1709 = vpop.f32.mrb[0].mxu0
      %v1710 = vadd.f32 0.0, %v1709
      %v1711 = vpop.f32.mrb[0].mxu0
      %v1712 = vpop.f32.mrb[0].mxu0
      %v1713 = vadd.f32 0.0, %v1712
      %v1714 = vpop.f32.mrb[0].mxu0
      %1715 = vmatprep.mubr.bf16.mxu0 0
      %1716 = vmatmul.mubr.bf16.gmra.mrb[0].mxu0 %v1589
      %v1717 = vpop.f32.mrb[0].mxu0
      %v1718 = vadd.f32 0.0, %v1717
      %v1719 = vpop.f32.mrb[0].mxu0
      %v1720 = vpop.f32.mrb[0].mxu0
      %v1721 = vadd.f32 0.0, %v1720
      %v1722 = vpop.f32.mrb[0].mxu0
      %1723 = vmatprep.mubr.bf16.mxu0 0
      %1724 = vmatmul.mubr.bf16.gmra.mrb[0].mxu0 %v1590
      %v1725 = vpop.f32.mrb[0].mxu0
      %v1726 = vadd.f32 0.0, %v1725
      %v1727 = vpop.f32.mrb[0].mxu0
      %v1728 = vpop.f32.mrb[0].mxu0
      %v1729 = vadd.f32 0.0, %v1728
      %v1730 = vpop.f32.mrb[0].mxu0
      %1731 = vmatprep.mubr.bf16.mxu0 0
      %1732 = vmatmul.mubr.bf16.gmra.mrb[0].mxu0 %v1591
      %v1733 = vpop.f32.mrb[0].mxu0
      %v1734 = vadd.f32 0.0, %v1733
      %v1735 = vpop.f32.mrb[0].mxu0
      %v1736 = vpop.f32.mrb[0].mxu0
      %v1737 = vadd.f32 0.0, %v1736
      %v1738 = vpop.f32.mrb[0].mxu0
      %1739 = vmatprep.mubr.bf16.mxu0 0
      %1740 = vmatmul.mubr.bf16.gmra.mrb[0].mxu0 %v1592
      %v1741 = vpop.f32.mrb[0].mxu0
      %v1742 = vadd.f32 0.0, %v1741
      %v1743 = vpop.f32.mrb[0].mxu0
      %v1744 = vpop.f32.mrb[0].mxu0
      %v1745 = vadd.f32 0.0, %v1744
      %v1746 = vpop.f32.mrb[0].mxu0
      %1747 = vmatprep.mubr.bf16.mxu0 0
      %1748 = vmatmul.mubr.bf16.gmra.mrb[0].mxu0 %v1593
      %v1749 = vpop.f32.mrb[0].mxu0
      %v1750 = vadd.f32 0.0, %v1749
      %v1751 = vpop.f32.mrb[0].mxu0
      %v1752 = vpop.f32.mrb[0].mxu0
      %v1753 = vadd.f32 0.0, %v1752
      %v1754 = vpop.f32.mrb[0].mxu0
      %1755 = vmatprep.mubr.bf16.mxu0 0
      %1756 = vmatmul.mubr.bf16.gmra.mrb[0].mxu0 %v1594
      %v1757 = vpop.f32.mrb[0].mxu0
      %v1758 = vadd.f32 0.0, %v1757
      %v1759 = vpop.f32.mrb[0].mxu0
      %v1760 = vpop.f32.mrb[0].mxu0
      %v1761 = vadd.f32 0.0, %v1760
      %v1762 = vpop.f32.mrb[0].mxu0
      %1763 = vmatprep.mubr.bf16.mxu0 0
      %1764 = vmatmul.mubr.bf16.gmra.mrb[0].mxu0 %v1595
      %v1765 = vpop.f32.mrb[0].mxu0
      %v1766 = vadd.f32 0.0, %v1765
      %v1767 = vpop.f32.mrb[0].mxu0
      %v1768 = vpop.f32.mrb[0].mxu0
      %v1769 = vadd.f32 0.0, %v1768
      %v1770 = vpop.f32.mrb[0].mxu0
      %1771 = vmatprep.mubr.bf16.mxu0 0
      %1772 = vmatmul.mubr.bf16.gmra.mrb[0].mxu0 %v1596
      %v1773 = vpop.f32.mrb[0].mxu0
      %v1774 = vadd.f32 0.0, %v1773
      %v1775 = vpop.f32.mrb[0].mxu0
      %v1776 = vpop.f32.mrb[0].mxu0
      %v1777 = vadd.f32 0.0, %v1776
      %v1778 = vpop.f32.mrb[0].mxu0
      %1779 = vmatprep.mubr.bf16.mxu0 0
      %1780 = vmatmul.mubr.bf16.gmra.mrb[0].mxu0 %v1597
      %v1781 = vpop.f32.mrb[0].mxu0
      %v1782 = vadd.f32 0.0, %v1781
      %v1783 = vpop.f32.mrb[0].mxu0
      %v1784 = vpop.f32.mrb[0].mxu0
      %v1785 = vadd.f32 0.0, %v1784
      %v1786 = vpop.f32.mrb[0].mxu0
      %1787 = vmatprep.mubr.bf16.mxu0 0
      %1788 = vmatmul.mubr.bf16.gmra.mrb[0].mxu0 %v1598
      %v1789 = vpop.f32.mrb[0].mxu0
      %v1790 = vadd.f32 0.0, %v1789
      %v1791 = vpop.f32.mrb[0].mxu0
      %v1792 = vpop.f32.mrb[0].mxu0
      %v1793 = vadd.f32 0.0, %v1792
      %v1794 = vpop.f32.mrb[0].mxu0
      %1795 = vmatprep.mubr.bf16.mxu0 0
      %1796 = vmatmul.mubr.bf16.gmra.mrb[0].mxu0 %v1599
      %v1797 = vpop.f32.mrb[0].mxu0
      %v1798 = vadd.f32 0.0, %v1797
      %v1799 = vpop.f32.mrb[0].mxu0
      %v1800 = vpop.f32.mrb[0].mxu0
      %v1801 = vadd.f32 0.0, %v1800
      %v1802 = vpop.f32.mrb[0].mxu0
      %1803 = vmatprep.mubr.bf16.mxu0 0
      %1804 = vmatmul.mubr.bf16.gmra.mrb[0].mxu0 %v1600
      %v1805 = vpop.f32.mrb[0].mxu0
      %v1806 = vadd.f32 0.0, %v1805
      %v1807 = vpop.f32.mrb[0].mxu0
      %v1808 = vpop.f32.mrb[0].mxu0
      %v1809 = vadd.f32 0.0, %v1808
      %v1810 = vpop.f32.mrb[0].mxu0
      %1811 = vmatprep.mubr.bf16.mxu0 0
      %1812 = vmatmul.mubr.bf16.gmra.mrb[0].mxu0 %v1601
      %v1813 = vpop.f32.mrb[0].mxu0
      %v1814 = vadd.f32 0.0, %v1813
      %v1815 = vpop.f32.mrb[0].mxu0
      %v1816 = vpop.f32.mrb[0].mxu0
      %v1817 = vadd.f32 0.0, %v1816
      %v1818 = vpop.f32.mrb[0].mxu0
      %1819 = vmatprep.mubr.bf16.mxu0 0
      %1820 = vmatmul.mubr.bf16.gmra.mrb[0].mxu0 %v1602
      %v1821 = vpop.f32.mrb[0].mxu0
      %v1822 = vadd.f32 0.0, %v1821
      %v1823 = vpop.f32.mrb[0].mxu0
      %v1824 = vpop.f32.mrb[0].mxu0
      %v1825 = vadd.f32 0.0, %v1824
      %v1826 = vpop.f32.mrb[0].mxu0
      %1827 = vdwg.mxu0
      %v1828 = vpack.c.bf16 %v1705, %v1702
      %v1829 = vpack.c.bf16 %v1713, %v1710
      %v1830 = vpack.c.bf16 %v1721, %v1718
      %v1831 = vpack.c.bf16 %v1729, %v1726
      %v1832 = vpack.c.bf16 %v1737, %v1734
      %v1833 = vpack.c.bf16 %v1745, %v1742
      %v1834 = vpack.c.bf16 %v1753, %v1750
      %v1835 = vpack.c.bf16 %v1761, %v1758
      %v1836 = vpack.c.bf16 %v1769, %v1766
      %v1837 = vpack.c.bf16 %v1777, %v1774
      %v1838 = vpack.c.bf16 %v1785, %v1782
      %v1839 = vpack.c.bf16 %v1793, %v1790
      %v1840 = vpack.c.bf16 %v1801, %v1798
      %v1841 = vpack.c.bf16 %v1809, %v1806
      %v1842 = vpack.c.bf16 %v1817, %v1814
      %v1843 = vpack.c.bf16 %v1825, %v1822
      %v1860 = vunpack.c.l.b16 %v1828
      %v1861 = vunpack.c.h.b16 %v1828
      %v1862 = vunpack.c.l.b16 %v1829
      %v1863 = vunpack.c.h.b16 %v1829
      %v1864 = vunpack.c.l.b16 %v1830
      %v1865 = vunpack.c.h.b16 %v1830
      %v1866 = vunpack.c.l.b16 %v1831
      %v1867 = vunpack.c.h.b16 %v1831
      %v1868 = vunpack.c.l.b16 %v1832
      %v1869 = vunpack.c.h.b16 %v1832
      %v1870 = vunpack.c.l.b16 %v1833
      %v1871 = vunpack.c.h.b16 %v1833
      %v1872 = vunpack.c.l.b16 %v1834
      %v1873 = vunpack.c.h.b16 %v1834
      %v1874 = vunpack.c.l.b16 %v1835
      %v1875 = vunpack.c.h.b16 %v1835
      %v1876 = vunpack.c.l.b16 %v1836
      %v1877 = vunpack.c.h.b16 %v1836
      %v1878 = vunpack.c.l.b16 %v1837
      %v1879 = vunpack.c.h.b16 %v1837
      %v1880 = vunpack.c.l.b16 %v1838
      %v1881 = vunpack.c.h.b16 %v1838
      %v1882 = vunpack.c.l.b16 %v1839
      %v1883 = vunpack.c.h.b16 %v1839
      %v1884 = vunpack.c.l.b16 %v1840
      %v1885 = vunpack.c.h.b16 %v1840
      %v1886 = vunpack.c.l.b16 %v1841
      %v1887 = vunpack.c.h.b16 %v1841
      %v1888 = vunpack.c.l.b16 %v1842
      %v1889 = vunpack.c.h.b16 %v1842
      %v1890 = vunpack.c.l.b16 %v1843
      %v1891 = vunpack.c.h.b16 %v1843
      %v1892 = vpack.c.b16 %v1860, %v1860
      %v1893 = vpack.c.b16 %v1861, %v1861
      %v1894 = vpack.c.b16 %v1862, %v1862
      %v1895 = vpack.c.b16 %v1863, %v1863
      %v1896 = vpack.c.b16 %v1864, %v1864
      %v1897 = vpack.c.b16 %v1865, %v1865
      %v1898 = vpack.c.b16 %v1866, %v1866
      %v1899 = vpack.c.b16 %v1867, %v1867
      %v1900 = vpack.c.b16 %v1868, %v1868
      %v1901 = vpack.c.b16 %v1869, %v1869
      %v1902 = vpack.c.b16 %v1870, %v1870
      %v1903 = vpack.c.b16 %v1871, %v1871
      %v1904 = vpack.c.b16 %v1872, %v1872
      %v1905 = vpack.c.b16 %v1873, %v1873
      %v1906 = vpack.c.b16 %v1874, %v1874
      %v1907 = vpack.c.b16 %v1875, %v1875
      %v1908 = vpack.c.b16 %v1876, %v1876
      %v1909 = vpack.c.b16 %v1877, %v1877
      %v1910 = vpack.c.b16 %v1878, %v1878
      %v1911 = vpack.c.b16 %v1879, %v1879
      %v1912 = vpack.c.b16 %v1880, %v1880
      %v1913 = vpack.c.b16 %v1881, %v1881
      %v1914 = vpack.c.b16 %v1882, %v1882
      %v1915 = vpack.c.b16 %v1883, %v1883
      %v1916 = vpack.c.b16 %v1884, %v1884
      %v1917 = vpack.c.b16 %v1885, %v1885
      %v1918 = vpack.c.b16 %v1886, %v1886
      %v1919 = vpack.c.b16 %v1887, %v1887
      %v1920 = vpack.c.b16 %v1888, %v1888
      %v1921 = vpack.c.b16 %v1889, %v1889
      %v1922 = vpack.c.b16 %v1890, %v1890
      %v1923 = vpack.c.b16 %v1891, %v1891
      %1956 = vst [vmem:[%s177] sm:$0xf] %v1892
      %1957 = vst [vmem:[%s177 + $0x4] sm:$0xf] %v1893
      %1958 = vst [vmem:[%s177 + $0x8] sm:$0xf] %v1894
      %1959 = vst [vmem:[%s177 + $0xc] sm:$0xf] %v1895
      %1960 = vst [vmem:[%s177 + $0x10] sm:$0xf] %v1896
      %1961 = vst [vmem:[%s177 + $0x14] sm:$0xf] %v1897
      %1962 = vst [vmem:[%s177 + $0x18] sm:$0xf] %v1898
      %1963 = vst [vmem:[%s177 + $0x1c] sm:$0xf] %v1899
      %1964 = vst [vmem:[%s177 + $0x20] sm:$0xf] %v1900
      %1965 = vst [vmem:[%s177 + $0x24] sm:$0xf] %v1901
      %1966 = vst [vmem:[%s177 + $0x28] sm:$0xf] %v1902
      %1967 = vst [vmem:[%s177 + $0x2c] sm:$0xf] %v1903
      %1968 = vst [vmem:[%s177 + $0x30] sm:$0xf] %v1904
      %1969 = vst [vmem:[%s177 + $0x34] sm:$0xf] %v1905
      %1970 = vst [vmem:[%s177 + $0x38] sm:$0xf] %v1906
      %1971 = vst [vmem:[%s177 + $0x3c] sm:$0xf] %v1907
      %1972 = vst [vmem:[%s177 + $0x40] sm:$0xf] %v1908
      %1973 = vst [vmem:[%s177 + $0x44] sm:$0xf] %v1909
      %1974 = vst [vmem:[%s177 + $0x48] sm:$0xf] %v1910
      %1975 = vst [vmem:[%s177 + $0x4c] sm:$0xf] %v1911
      %1976 = vst [vmem:[%s177 + $0x50] sm:$0xf] %v1912
      %1977 = vst [vmem:[%s177 + $0x54] sm:$0xf] %v1913
      %1978 = vst [vmem:[%s177 + $0x58] sm:$0xf] %v1914
      %1979 = vst [vmem:[%s177 + $0x5c] sm:$0xf] %v1915
      %1980 = vst [vmem:[%s177 + $0x60] sm:$0xf] %v1916
      %1981 = vst [vmem:[%s177 + $0x64] sm:$0xf] %v1917
      %1982 = vst [vmem:[%s177 + $0x68] sm:$0xf] %v1918
      %1983 = vst [vmem:[%s177 + $0x6c] sm:$0xf] %v1919
      %1984 = vst [vmem:[%s177 + $0x70] sm:$0xf] %v1920
      %1985 = vst [vmem:[%s177 + $0x74] sm:$0xf] %v1921
      %1986 = vst [vmem:[%s177 + $0x78] sm:$0xf] %v1922
      %1987 = vst [vmem:[%s177 + $0x7c] sm:$0xf] %v1923
      %v1988 = vadd.f32 %v1702, %v1705
      %v1989 = vadd.f32 %v1988, %v1710
      %v1990 = vadd.f32 %v1989, %v1713
      %v1991 = vadd.f32 %v1990, %v1718
      %v1992 = vadd.f32 %v1991, %v1721
      %v1993 = vadd.f32 %v1992, %v1726
      %v1994 = vadd.f32 %v1993, %v1729
      %v1995 = vadd.f32 %v1994, %v1734
      %v1996 = vadd.f32 %v1995, %v1737
      %v1997 = vadd.f32 %v1996, %v1742
      %v1998 = vadd.f32 %v1997, %v1745
      %v1999 = vadd.f32 %v1998, %v1750
      %v2000 = vadd.f32 %v1999, %v1753
      %v2001 = vadd.f32 %v2000, %v1758
      %v2002 = vadd.f32 %v2001, %v1761
      %v2003 = vadd.f32 %v2002, %v1766
      %v2004 = vadd.f32 %v2003, %v1769
      %v2005 = vadd.f32 %v2004, %v1774
      %v2006 = vadd.f32 %v2005, %v1777
      %v2007 = vadd.f32 %v2006, %v1782
      %v2008 = vadd.f32 %v2007, %v1785
      %v2009 = vadd.f32 %v2008, %v1790
      %v2010 = vadd.f32 %v2009, %v1793
      %v2011 = vadd.f32 %v2010, %v1798
      %v2012 = vadd.f32 %v2011, %v1801
      %v2013 = vadd.f32 %v2012, %v1806
      %v2014 = vadd.f32 %v2013, %v1809
      %v2015 = vadd.f32 %v2014, %v1814
      %v2016 = vadd.f32 %v2015, %v1817
      %v2017 = vadd.f32 %v2016, %v1822
      %v2018 = vadd.f32 %v2017, %v1825
      %v2019 = vrot.slane %v2018, 4
      %v2020 = vadd.f32 %v2018, %v2019
      %v2021 = vrot.slane %v2020, 2
      %v2022 = vadd.f32 %v2020, %v2021
      %v2023 = vrot.slane %v2022, 1
      %v2024 = vadd.f32 %v2022, %v2023
      %v2025 = vmul.f32 %v1702, %v1702
      %v2026 = vmul.f32 %v1705, %v1705
      %v2027 = vmul.f32 %v1710, %v1710
      %v2028 = vmul.f32 %v1713, %v1713
      %v2029 = vmul.f32 %v1718, %v1718
      %v2030 = vmul.f32 %v1721, %v1721
      %v2031 = vmul.f32 %v1726, %v1726
      %v2032 = vmul.f32 %v1729, %v1729
      %v2033 = vmul.f32 %v1734, %v1734
      %v2034 = vmul.f32 %v1737, %v1737
      %v2035 = vmul.f32 %v1742, %v1742
      %v2036 = vmul.f32 %v1745, %v1745
      %v2037 = vmul.f32 %v1750, %v1750
      %v2038 = vmul.f32 %v1753, %v1753
      %v2039 = vmul.f32 %v1758, %v1758
      %v2040 = vmul.f32 %v1761, %v1761
      %v2041 = vmul.f32 %v1766, %v1766
      %v2042 = vmul.f32 %v1769, %v1769
      %v2043 = vmul.f32 %v1774, %v1774
      %v2044 = vmul.f32 %v1777, %v1777
      %v2045 = vmul.f32 %v1782, %v1782
      %v2046 = vmul.f32 %v1785, %v1785
      %v2047 = vmul.f32 %v1790, %v1790
      %v2048 = vmul.f32 %v1793, %v1793
      %v2049 = vmul.f32 %v1798, %v1798
      %v2050 = vmul.f32 %v1801, %v1801
      %v2051 = vmul.f32 %v1806, %v1806
      %v2052 = vmul.f32 %v1809, %v1809
      %v2053 = vmul.f32 %v1814, %v1814
      %v2054 = vmul.f32 %v1817, %v1817
      %v2055 = vmul.f32 %v1822, %v1822
      %v2056 = vmul.f32 %v1825, %v1825
      %v2057 = vadd.f32 %v2025, %v2026
      %v2058 = vadd.f32 %v2057, %v2027
      %v2059 = vadd.f32 %v2058, %v2028
      %v2060 = vadd.f32 %v2059, %v2029
      %v2061 = vadd.f32 %v2060, %v2030
      %v2062 = vadd.f32 %v2061, %v2031
      %v2063 = vadd.f32 %v2062, %v2032
      %v2064 = vadd.f32 %v2063, %v2033
      %v2065 = vadd.f32 %v2064, %v2034
      %v2066 = vadd.f32 %v2065, %v2035
      %v2067 = vadd.f32 %v2066, %v2036
      %v2068 = vadd.f32 %v2067, %v2037
      %v2069 = vadd.f32 %v2068, %v2038
      %v2070 = vadd.f32 %v2069, %v2039
      %v2071 = vadd.f32 %v2070, %v2040
      %v2072 = vadd.f32 %v2071, %v2041
      %v2073 = vadd.f32 %v2072, %v2042
      %v2074 = vadd.f32 %v2073, %v2043
      %v2075 = vadd.f32 %v2074, %v2044
      %v2076 = vadd.f32 %v2075, %v2045
      %v2077 = vadd.f32 %v2076, %v2046
      %v2078 = vadd.f32 %v2077, %v2047
      %v2079 = vadd.f32 %v2078, %v2048
      %v2080 = vadd.f32 %v2079, %v2049
      %v2081 = vadd.f32 %v2080, %v2050
      %v2082 = vadd.f32 %v2081, %v2051
      %v2083 = vadd.f32 %v2082, %v2052
      %v2084 = vadd.f32 %v2083, %v2053
      %v2085 = vadd.f32 %v2084, %v2054
      %v2086 = vadd.f32 %v2085, %v2055
      %v2087 = vadd.f32 %v2086, %v2056
      %v2088 = vrot.slane %v2087, 4
      %v2089 = vadd.f32 %v2087, %v2088
      %v2090 = vrot.slane %v2089, 2
      %v2091 = vadd.f32 %v2089, %v2090
      %v2092 = vrot.slane %v2091, 1
      %v2093 = vadd.f32 %v2091, %v2092
      %vm2094 = vcmask 1040384
      %v2095 = vsel %vm2094, %v2024, %v2093
      %vm2096 = vcmask 1041408
      %v2097 = vsel %vm2096, %v2095, 0.0
      %2098 = vst [vmem:[%s181] sm:$0xff] %v2097
      %p2099 = scmp.lt.s32.totalorder %s15, 1
      %s2100 = scalar_select %p2099, %s15, 1
      %s2101 = smul.addr %s2100, 32
      %s2102 = smul.addr %s2101, 4
      %s2103 = scalar_lea.vmem %s2, %s2102
      %p2104 = scmp.lt.s32.totalorder %s15, 1
      %s2105 = scalar_select %p2104, %s15, 1
      %s2106 = smul.addr %s2105, 8
      %s2107 = scalar_lea.vmem %s3, %s2106
      // Predicated region
      $region29: #{conv_block1_forward.3} parent=27 // pred_check
        %p2108 = pneg %p80
      $region30: #{conv_block1_forward.3} parent=27 // pred_check_branch
        %2110 = sbr.rel (%p2108) target = $region32
      $region31: #{conv_block1_forward.3} parent=27 // pred_region
        _
      $region32: #{conv_block1_forward.3} parent=27 // pred_fallthru
        _
      // Predicated region
      $region33: #{conv_block1_forward.3} parent=27 // pred_check
        %p2111 = pneg %p106
      $region34: #{conv_block1_forward.3} parent=27 // pred_check_branch
        %2113 = sbr.rel (%p2111) target = $region36
      $region35: #{conv_block1_forward.3} parent=27 // pred_region
        _
      $region36: #{conv_block1_forward.3} parent=27 // pred_fallthru
        _
    $region28: #{conv_block1_forward.3} parent=5 // pred_fallthru
      _
    %p2114 = scmp.le.s32.totalorder 2, %s10
    // Predicated region
    $region37: #{conv_block1_forward.3} parent=5 // pred_check
      %p2115 = pneg %p2114
    $region38: #{conv_block1_forward.3} parent=5 // pred_check_branch
      %2117 = sbr.rel (%p2115) target = $region40
    $region39: #{conv_block1_forward.3} parent=5 // pred_region
      %s2118 = ssub.s32 %s10, 2
      // Predicated region
      $region41: #{conv_block1_forward.3} parent=39 // pred_check
        %p2119 = pneg %p86
      $region42: #{conv_block1_forward.3} parent=39 // pred_check_branch
        %2121 = sbr.rel (%p2119) target = $region44
      $region43: #{conv_block1_forward.3} parent=39 // pred_region
        %p2122 = scmp.lt.s32.totalorder %s16, 1
        %s2123 = scalar_select %p2122, %s16, 1
        %s2124 = smul.addr %s2123, 32
        %s2125 = smul.addr %s2124, 4
        %s2126 = scalar_lea.vmem %s2, %s2125
      $region44: #{conv_block1_forward.3} parent=39 // pred_fallthru
        _
      // Predicated region
      $region45: #{conv_block1_forward.3} parent=39 // pred_check
        %p2127 = pneg %p112
      $region46: #{conv_block1_forward.3} parent=39 // pred_check_branch
        %2129 = sbr.rel (%p2127) target = $region48
      $region47: #{conv_block1_forward.3} parent=39 // pred_region
        %p2130 = scmp.lt.s32.totalorder %s16, 1
        %s2131 = scalar_select %p2130, %s16, 1
        %s2132 = smul.addr %s2131, 8
        %s2133 = scalar_lea.vmem %s3, %s2132
      $region48: #{conv_block1_forward.3} parent=39 // pred_fallthru
        _
    $region40: #{conv_block1_forward.3} parent=5 // pred_fallthru
      _
  $region6: #{conv_block1_forward.3} parent=0 // loop_footer
    %s14 = sadd.s32 1, %s10
  $region7: #{conv_block1_forward.3} parent=0 // loop_footer_branch
    %9 = sbr.rel target = $region3
  $region8: #{conv_block1_forward.3} parent=0 // loop_exit
    _

</llo_original>
